<compile_context>
chip_gen: v7x
topology: tpu7x:2x2x1
jax: 0.10.0
libtpu: 0.0.40
codegen_flags: <defaults>
</compile_context>

<pallas_src>
import functools

import jax
import jax.numpy as jnp
import numpy as np
from jax import lax
from jax.experimental import pallas as pl
from jax.experimental.pallas import tpu as pltpu

KSIZE = 7
CHANNELS = KSIZE * KSIZE          # 49
PAD = KSIZE // 2                  # 3
LAMBD = 0.5                       # nn.Softshrink default


def _round_up(x, m):
    return ((x + m - 1) // m) * m


def _dct_fused_kernel(x_ref, w1_ref, b1_ref, w2_ref, mask_ref, b2_ref,
                      out_ref, vp_ref, *, H, W, MPP):
    """One image per grid step; patches / U / V never leave VMEM.

    Pixels are enumerated in padded row-major order q = y*L + x, L = W + 6.
    In that enumeration tap k = i*7 + j of every pixel is the contiguous lane
    window xflat[i*L + j : i*L + j + MPP], so im2col is 49 lane slices + one
    sublane concat and both convolutions are (49,49)@(49,MPP) MXU matmuls.
    """
    L = W + 2 * PAD                       # padded row width
    MP = H * L                            # real pixels (incl. junk columns)
    PADL = PAD * L + PAD                  # scatter halo needed (3L + 3 lanes)
    HALO = _round_up(PADL, 128)           # 128-aligned halo actually allocated

    xrow = x_ref[0]                       # (1, LP) flattened zero-padded image

    # ---- in-kernel im2col: row k = tap (i, j) of every pixel ---------------
    rows = [xrow[:, i * L + j: i * L + j + MPP]
            for i in range(KSIZE) for j in range(KSIZE)]
    p1t = jnp.concatenate(rows, axis=0)                        # (49, MPP)

    # ---- direct transform (Conv2d) + bias + softshrink ---------------------
    u = jnp.dot(w1_ref[...], p1t, preferred_element_type=jnp.float32)
    u = u + b1_ref[...]                                        # (49, MPP)
    u = u - jnp.clip(u, -LAMBD, LAMBD)                         # softshrink

    # ---- inverse transform, part 1: per-pixel channel mix  V = W2m @ U -----
    v = jnp.dot(w2_ref[...], u, preferred_element_type=jnp.float32)
    v = v * mask_ref[...]                 # zero junk columns and the MPP tail

    # ---- inverse transform, part 2: 7x7 shifted accumulate -----------------
    # Zero only the two halo strips (aligned stores); the middle is fully
    # overwritten by v at a 128-aligned lane offset (unmasked vst).
    vp_ref[:, 0:HALO] = jnp.zeros((CHANNELS, HALO), jnp.float32)
    vp_ref[:, HALO + MPP:MPP + 2 * HALO] = jnp.zeros((CHANNELS, HALO),
                                                     jnp.float32)
    vp_ref[:, HALO:HALO + MPP] = v

    base = HALO - PADL
    offs = [(a * KSIZE + b, base + a * L + b)
            for a in range(KSIZE) for b in range(KSIZE)]
    # 8 independent partial accumulators -> short critical chain on VALU.
    NACC = 8
    accs = [vp_ref[k:k + 1, s:s + MPP] for k, s in offs[:NACC]]
    for idx in range(NACC, len(offs)):
        k, s = offs[idx]
        accs[idx % NACC] = accs[idx % NACC] + vp_ref[k:k + 1, s:s + MPP]
    acc = (((accs[0] + accs[1]) + (accs[2] + accs[3]))
           + ((accs[4] + accs[5]) + (accs[6] + accs[7])))      # (1, MPP)

    # ---- residual + output bias, lane-dense (aligned) store ----------------
    xres = xrow[:, PADL:PADL + MPP]       # original pixels in q-order
    out_ref[0] = xres + acc + b2_ref[...]


@jax.jit
def dct_forward(x, w1, b1, w2t, b2):
    """
    x   : [N, 1, H, W]   float32
    w1  : [49, 1, 7, 7]  Conv2d weight
    b1  : [49]           Conv2d bias
    w2t : [49, 1, 7, 7]  ConvTranspose2d weight (in, out, kh, kw)
    b2  : [1]            ConvTranspose2d bias
    returns [N, 1, H, W]
    """
    N, C, H, W = x.shape
    assert C == 1
    L = W + 2 * PAD
    MP = H * L
    MPP = _round_up(MP, 128)              # lane-padded pixel count
    PADL = PAD * L + PAD
    HALO = _round_up(PADL, 128)
    LP = 2 * PADL + MPP                   # flat length so every slice is in range

    # zero-pad spatially and flatten each image into one long lane vector
    x_pad = jnp.pad(x[:, 0], ((0, 0), (PAD, PAD), (PAD, PAD)))   # (N, H+6, L)
    xflat = x_pad.reshape(N, 1, (H + 2 * PAD) * L)
    tail = LP - (H + 2 * PAD) * L                                # >= 2*PAD
    xflat = jnp.pad(xflat, ((0, 0), (0, 0), (0, tail)))          # (N, 1, LP)

    # Conv2d weight -> [49 out-channels, 49 taps]; bias as a column
    w1m = w1.reshape(CHANNELS, CHANNELS)
    b1m = b1.reshape(CHANNELS, 1)
    # ConvTranspose2d(stride=1, pad=3) == same-pad conv with flipped kernel:
    #   w2m[(a*7+b), c] = w2t[c, 0, 6-a, 6-b]
    w2m = jnp.flip(w2t[:, 0], axis=(1, 2)).reshape(CHANNELS, CHANNELS).T
    b2m = b2.reshape(1, 1)

    # lane mask: 1.0 on real pixels (x < W and q < MP), 0.0 elsewhere
    q = jnp.arange(MPP, dtype=jnp.int32)
    mask = ((q % L < W) & (q < MP)).astype(jnp.float32).reshape(1, MPP)

    kernel = functools.partial(_dct_fused_kernel, H=H, W=W, MPP=MPP)

    # VMEM budget: scatter scratch + (p1t, u, v) temporaries + double-buffered
    # I/O + weights, with 25% headroom; never below the 32 MiB default, never
    # above 96 MiB.
    vp_lanes = MPP + 2 * HALO
    vmem_needed = 4 * (CHANNELS * vp_lanes            # scratch
                       + 3 * CHANNELS * MPP           # p1t / u / v
                       + 2 * (LP + 2 * MPP)           # x, mask, out (x2 bufs)
                       + 4 * CHANNELS * CHANNELS)     # weights / biases
    vmem_limit = int(min(max(vmem_needed * 5 // 4, 32 * 1024 * 1024),
                         96 * 1024 * 1024))

    cost = pl.CostEstimate(
        flops=4 * N * CHANNELS * CHANNELS * MPP,      # two 49x49xMPP matmuls
        transcendentals=0,
        bytes_accessed=N * (LP + 2 * MPP) * 4)

    out_flat = pl.pallas_call(
        kernel,
        out_shape=jax.ShapeDtypeStruct((N, 1, MPP), jnp.float32),
        grid_spec=pltpu.PrefetchScalarGridSpec(
            num_scalar_prefetch=0,
            grid=(N,),
            in_specs=[
                pl.BlockSpec((1, 1, LP), lambda n: (n, 0, 0)),
                pl.BlockSpec((CHANNELS, CHANNELS), lambda n: (0, 0)),
                pl.BlockSpec((CHANNELS, 1), lambda n: (0, 0)),
                pl.BlockSpec((CHANNELS, CHANNELS), lambda n: (0, 0)),
                pl.BlockSpec((1, MPP), lambda n: (0, 0)),
                pl.BlockSpec((1, 1), lambda n: (0, 0)),
            ],
            out_specs=pl.BlockSpec((1, 1, MPP), lambda n: (n, 0, 0)),
            scratch_shapes=[
                pltpu.VMEM((CHANNELS, vp_lanes), jnp.float32),
            ],
        ),
        compiler_params=pltpu.CompilerParams(
            dimension_semantics=("parallel",),   # keep N >= 2 per call on v7x
            vmem_limit_bytes=vmem_limit),
        cost_estimate=cost,
    )(xflat, w1m, b1m, w2m, mask, b2m)

    out = out_flat[:, 0, :MP].reshape(N, H, L)[:, :, :W]   # crop junk columns
    return out[:, None, :, :]


# ----------------------------------------------------------------------------
# Pure-JAX reference (lax convs), used to verify kernel semantics.
# ----------------------------------------------------------------------------
def dct_reference(x, w1, b1, w2t, b2):
    dn = ("NCHW", "OIHW", "NCHW")
    z = lax.conv_general_dilated(x, w1, (1, 1), ((PAD, PAD), (PAD, PAD)),
                                 dimension_numbers=dn)
    z = z + b1[None, :, None, None]
    u = jnp.where(z > LAMBD, z - LAMBD,
                  jnp.where(z < -LAMBD, z + LAMBD, 0.0))
    # ConvTranspose2d(stride=1) == conv with flipped + transposed kernel
    w2_conv = jnp.flip(w2t, axis=(2, 3)).transpose(1, 0, 2, 3)  # [1,49,7,7]
    y = lax.conv_general_dilated(u, w2_conv, (1, 1),
                                 ((PAD, PAD), (PAD, PAD)),
                                 dimension_numbers=dn)
    return x + y + b2[None, :, None, None]


if __name__ == "__main__":
    key = jax.random.PRNGKey(0)
    kx, k1, k2, k3, k4 = jax.random.split(key, 5)

    N, H, W = 2, 16, 16
    x = jax.random.normal(kx, (N, 1, H, W), dtype=jnp.float32)

    # Deterministic parameter init (PyTorch-style uniform bounds).
    bound1 = 1.0 / np.sqrt(1 * KSIZE * KSIZE)
    w1 = jax.random.uniform(k1, (CHANNELS, 1, KSIZE, KSIZE),
                            minval=-bound1, maxval=bound1, dtype=jnp.float32)
    b1 = jax.random.uniform(k2, (CHANNELS,),
                            minval=-bound1, maxval=bound1, dtype=jnp.float32)
    bound2 = 1.0 / np.sqrt(1 * KSIZE * KSIZE)
    w2t = jax.random.uniform(k3, (CHANNELS, 1, KSIZE, KSIZE),
                             minval=-bound2, maxval=bound2, dtype=jnp.float32)
    b2 = jax.random.uniform(k4, (1,),
                            minval=-bound2, maxval=bound2, dtype=jnp.float32)

    out = dct_forward(x, w1, b1, w2t, b2)
    out = jax.block_until_ready(out)

    ref = jax.block_until_ready(dct_reference(x, w1, b1, w2t, b2))
    np.testing.assert_allclose(np.asarray(out), np.asarray(ref),
                               rtol=1e-4, atol=1e-4)
    assert out.shape == (N, 1, H, W)
    print("KERNEL_OK")
</pallas_src>

<mosaic_0001>
module attributes {stable_mosaic.version = 11 : i64} {
  func.func @_dct_fused_kernel(%arg0: i32, %arg1: memref<1x1x522xf32, #tpu.memory_space<vmem>>, %arg2: memref<49x49xf32, #tpu.memory_space<vmem>>, %arg3: memref<49x1xf32, #tpu.memory_space<vmem>>, %arg4: memref<49x49xf32, #tpu.memory_space<vmem>>, %arg5: memref<1x384xf32, #tpu.memory_space<vmem>>, %arg6: memref<1x1xf32, #tpu.memory_space<vmem>>, %arg7: memref<1x1x384xf32, #tpu.memory_space<vmem>>, %arg8: memref<49x640xf32, #tpu.memory_space<vmem>>) attributes {dimension_semantics = [#tpu.dimension_semantics<parallel>], iteration_bounds = array<i64: 2>, scalar_prefetch = 0 : i64, scratch_operands = 1 : i64, tpu.core_type = #tpu.core_type<tc>, window_params = [{transform_indices = @transform_0, window_bounds = array<i64: 1, 1, 522>}, {pipeline_mode = #tpu.pipeline_mode<synchronous>, transform_indices = @transform_1, window_bounds = array<i64: 49, 49>}, {pipeline_mode = #tpu.pipeline_mode<synchronous>, transform_indices = @transform_2, window_bounds = array<i64: 49, 1>}, {pipeline_mode = #tpu.pipeline_mode<synchronous>, transform_indices = @transform_3, window_bounds = array<i64: 49, 49>}, {pipeline_mode = #tpu.pipeline_mode<synchronous>, transform_indices = @transform_4, window_bounds = array<i64: 1, 384>}, {pipeline_mode = #tpu.pipeline_mode<synchronous>, transform_indices = @transform_5, window_bounds = array<i64: 1, 1>}, {transform_indices = @transform_6, window_bounds = array<i64: 1, 1, 384>}]} {
    %c0 = arith.constant 0 : index
    %c0_0 = arith.constant 0 : index
    %c0_1 = arith.constant 0 : index
    %0 = vector.load %arg1[%c0, %c0_0, %c0_1] : memref<1x1x522xf32, #tpu.memory_space<vmem>>, vector<1x1x522xf32>
    %1 = vector.shape_cast %0 : vector<1x1x522xf32> to vector<1x522xf32>
    %2 = vector.extract_strided_slice %1 {offsets = [0, 0], sizes = [1, 384], strides = [1, 1]} : vector<1x522xf32> to vector<1x384xf32>
    %3 = vector.extract_strided_slice %1 {offsets = [0, 1], sizes = [1, 384], strides = [1, 1]} : vector<1x522xf32> to vector<1x384xf32>
    %4 = vector.extract_strided_slice %1 {offsets = [0, 2], sizes = [1, 384], strides = [1, 1]} : vector<1x522xf32> to vector<1x384xf32>
    %5 = vector.extract_strided_slice %1 {offsets = [0, 3], sizes = [1, 384], strides = [1, 1]} : vector<1x522xf32> to vector<1x384xf32>
    %6 = vector.extract_strided_slice %1 {offsets = [0, 4], sizes = [1, 384], strides = [1, 1]} : vector<1x522xf32> to vector<1x384xf32>
    %7 = vector.extract_strided_slice %1 {offsets = [0, 5], sizes = [1, 384], strides = [1, 1]} : vector<1x522xf32> to vector<1x384xf32>
    %8 = vector.extract_strided_slice %1 {offsets = [0, 6], sizes = [1, 384], strides = [1, 1]} : vector<1x522xf32> to vector<1x384xf32>
    %9 = vector.extract_strided_slice %1 {offsets = [0, 22], sizes = [1, 384], strides = [1, 1]} : vector<1x522xf32> to vector<1x384xf32>
    %10 = vector.extract_strided_slice %1 {offsets = [0, 23], sizes = [1, 384], strides = [1, 1]} : vector<1x522xf32> to vector<1x384xf32>
    %11 = vector.extract_strided_slice %1 {offsets = [0, 24], sizes = [1, 384], strides = [1, 1]} : vector<1x522xf32> to vector<1x384xf32>
    %12 = vector.extract_strided_slice %1 {offsets = [0, 25], sizes = [1, 384], strides = [1, 1]} : vector<1x522xf32> to vector<1x384xf32>
    %13 = vector.extract_strided_slice %1 {offsets = [0, 26], sizes = [1, 384], strides = [1, 1]} : vector<1x522xf32> to vector<1x384xf32>
    %14 = vector.extract_strided_slice %1 {offsets = [0, 27], sizes = [1, 384], strides = [1, 1]} : vector<1x522xf32> to vector<1x384xf32>
    %15 = vector.extract_strided_slice %1 {offsets = [0, 28], sizes = [1, 384], strides = [1, 1]} : vector<1x522xf32> to vector<1x384xf32>
    %16 = vector.extract_strided_slice %1 {offsets = [0, 44], sizes = [1, 384], strides = [1, 1]} : vector<1x522xf32> to vector<1x384xf32>
    %17 = vector.extract_strided_slice %1 {offsets = [0, 45], sizes = [1, 384], strides = [1, 1]} : vector<1x522xf32> to vector<1x384xf32>
    %18 = vector.extract_strided_slice %1 {offsets = [0, 46], sizes = [1, 384], strides = [1, 1]} : vector<1x522xf32> to vector<1x384xf32>
    %19 = vector.extract_strided_slice %1 {offsets = [0, 47], sizes = [1, 384], strides = [1, 1]} : vector<1x522xf32> to vector<1x384xf32>
    %20 = vector.extract_strided_slice %1 {offsets = [0, 48], sizes = [1, 384], strides = [1, 1]} : vector<1x522xf32> to vector<1x384xf32>
    %21 = vector.extract_strided_slice %1 {offsets = [0, 49], sizes = [1, 384], strides = [1, 1]} : vector<1x522xf32> to vector<1x384xf32>
    %22 = vector.extract_strided_slice %1 {offsets = [0, 50], sizes = [1, 384], strides = [1, 1]} : vector<1x522xf32> to vector<1x384xf32>
    %23 = vector.extract_strided_slice %1 {offsets = [0, 66], sizes = [1, 384], strides = [1, 1]} : vector<1x522xf32> to vector<1x384xf32>
    %24 = vector.extract_strided_slice %1 {offsets = [0, 67], sizes = [1, 384], strides = [1, 1]} : vector<1x522xf32> to vector<1x384xf32>
    %25 = vector.extract_strided_slice %1 {offsets = [0, 68], sizes = [1, 384], strides = [1, 1]} : vector<1x522xf32> to vector<1x384xf32>
    %26 = vector.extract_strided_slice %1 {offsets = [0, 69], sizes = [1, 384], strides = [1, 1]} : vector<1x522xf32> to vector<1x384xf32>
    %27 = vector.extract_strided_slice %1 {offsets = [0, 70], sizes = [1, 384], strides = [1, 1]} : vector<1x522xf32> to vector<1x384xf32>
    %28 = vector.extract_strided_slice %1 {offsets = [0, 71], sizes = [1, 384], strides = [1, 1]} : vector<1x522xf32> to vector<1x384xf32>
    %29 = vector.extract_strided_slice %1 {offsets = [0, 72], sizes = [1, 384], strides = [1, 1]} : vector<1x522xf32> to vector<1x384xf32>
    %30 = vector.extract_strided_slice %1 {offsets = [0, 88], sizes = [1, 384], strides = [1, 1]} : vector<1x522xf32> to vector<1x384xf32>
    %31 = vector.extract_strided_slice %1 {offsets = [0, 89], sizes = [1, 384], strides = [1, 1]} : vector<1x522xf32> to vector<1x384xf32>
    %32 = vector.extract_strided_slice %1 {offsets = [0, 90], sizes = [1, 384], strides = [1, 1]} : vector<1x522xf32> to vector<1x384xf32>
    %33 = vector.extract_strided_slice %1 {offsets = [0, 91], sizes = [1, 384], strides = [1, 1]} : vector<1x522xf32> to vector<1x384xf32>
    %34 = vector.extract_strided_slice %1 {offsets = [0, 92], sizes = [1, 384], strides = [1, 1]} : vector<1x522xf32> to vector<1x384xf32>
    %35 = vector.extract_strided_slice %1 {offsets = [0, 93], sizes = [1, 384], strides = [1, 1]} : vector<1x522xf32> to vector<1x384xf32>
    %36 = vector.extract_strided_slice %1 {offsets = [0, 94], sizes = [1, 384], strides = [1, 1]} : vector<1x522xf32> to vector<1x384xf32>
    %37 = vector.extract_strided_slice %1 {offsets = [0, 110], sizes = [1, 384], strides = [1, 1]} : vector<1x522xf32> to vector<1x384xf32>
    %38 = vector.extract_strided_slice %1 {offsets = [0, 111], sizes = [1, 384], strides = [1, 1]} : vector<1x522xf32> to vector<1x384xf32>
    %39 = vector.extract_strided_slice %1 {offsets = [0, 112], sizes = [1, 384], strides = [1, 1]} : vector<1x522xf32> to vector<1x384xf32>
    %40 = vector.extract_strided_slice %1 {offsets = [0, 113], sizes = [1, 384], strides = [1, 1]} : vector<1x522xf32> to vector<1x384xf32>
    %41 = vector.extract_strided_slice %1 {offsets = [0, 114], sizes = [1, 384], strides = [1, 1]} : vector<1x522xf32> to vector<1x384xf32>
    %42 = vector.extract_strided_slice %1 {offsets = [0, 115], sizes = [1, 384], strides = [1, 1]} : vector<1x522xf32> to vector<1x384xf32>
    %43 = vector.extract_strided_slice %1 {offsets = [0, 116], sizes = [1, 384], strides = [1, 1]} : vector<1x522xf32> to vector<1x384xf32>
    %44 = vector.extract_strided_slice %1 {offsets = [0, 132], sizes = [1, 384], strides = [1, 1]} : vector<1x522xf32> to vector<1x384xf32>
    %45 = vector.extract_strided_slice %1 {offsets = [0, 133], sizes = [1, 384], strides = [1, 1]} : vector<1x522xf32> to vector<1x384xf32>
    %46 = vector.extract_strided_slice %1 {offsets = [0, 134], sizes = [1, 384], strides = [1, 1]} : vector<1x522xf32> to vector<1x384xf32>
    %47 = vector.extract_strided_slice %1 {offsets = [0, 135], sizes = [1, 384], strides = [1, 1]} : vector<1x522xf32> to vector<1x384xf32>
    %48 = vector.extract_strided_slice %1 {offsets = [0, 136], sizes = [1, 384], strides = [1, 1]} : vector<1x522xf32> to vector<1x384xf32>
    %49 = vector.extract_strided_slice %1 {offsets = [0, 137], sizes = [1, 384], strides = [1, 1]} : vector<1x522xf32> to vector<1x384xf32>
    %50 = vector.extract_strided_slice %1 {offsets = [0, 138], sizes = [1, 384], strides = [1, 1]} : vector<1x522xf32> to vector<1x384xf32>
    %51 = tpu.concatenate %2, %3, %4, %5, %6, %7, %8, %9, %10, %11, %12, %13, %14, %15, %16, %17 in 0 : vector<1x384xf32>, vector<1x384xf32>, vector<1x384xf32>, vector<1x384xf32>, vector<1x384xf32>, vector<1x384xf32>, vector<1x384xf32>, vector<1x384xf32>, vector<1x384xf32>, vector<1x384xf32>, vector<1x384xf32>, vector<1x384xf32>, vector<1x384xf32>, vector<1x384xf32>, vector<1x384xf32>, vector<1x384xf32> -> vector<16x384xf32>
    %52 = tpu.concatenate %18, %19, %20, %21, %22, %23, %24, %25, %26, %27, %28, %29, %30, %31, %32, %33 in 0 : vector<1x384xf32>, vector<1x384xf32>, vector<1x384xf32>, vector<1x384xf32>, vector<1x384xf32>, vector<1x384xf32>, vector<1x384xf32>, vector<1x384xf32>, vector<1x384xf32>, vector<1x384xf32>, vector<1x384xf32>, vector<1x384xf32>, vector<1x384xf32>, vector<1x384xf32>, vector<1x384xf32>, vector<1x384xf32> -> vector<16x384xf32>
    %53 = tpu.concatenate %34, %35, %36, %37, %38, %39, %40, %41, %42, %43, %44, %45, %46, %47, %48, %49 in 0 : vector<1x384xf32>, vector<1x384xf32>, vector<1x384xf32>, vector<1x384xf32>, vector<1x384xf32>, vector<1x384xf32>, vector<1x384xf32>, vector<1x384xf32>, vector<1x384xf32>, vector<1x384xf32>, vector<1x384xf32>, vector<1x384xf32>, vector<1x384xf32>, vector<1x384xf32>, vector<1x384xf32>, vector<1x384xf32> -> vector<16x384xf32>
    %54 = tpu.concatenate %51, %52, %53, %50 in 0 : vector<16x384xf32>, vector<16x384xf32>, vector<16x384xf32>, vector<1x384xf32> -> vector<49x384xf32>
    %c0_2 = arith.constant 0 : index
    %c0_3 = arith.constant 0 : index
    %55 = vector.load %arg2[%c0_2, %c0_3] : memref<49x49xf32, #tpu.memory_space<vmem>>, vector<49x49xf32>
    %cst = arith.constant dense<0.000000e+00> : vector<49x384xf32>
    %56 = tpu.matmul %55, %54, %cst {dimension_numbers = #tpu.dot_dimension_numbers<[1], [0], [0], [1], [0, 0, 1, 1], [], []>} : vector<49x49xf32>, vector<49x384xf32>, vector<49x384xf32> -> vector<49x384xf32>
    %c0_4 = arith.constant 0 : index
    %c0_5 = arith.constant 0 : index
    %57 = vector.load %arg3[%c0_4, %c0_5] : memref<49x1xf32, #tpu.memory_space<vmem>>, vector<49x1xf32>
    %58 = vector.broadcast %57 : vector<49x1xf32> to vector<49x384xf32>
    %59 = arith.addf %56, %58 : vector<49x384xf32>
    %cst_6 = arith.constant -5.000000e-01 : f32
    %cst_7 = arith.constant 5.000000e-01 : f32
    %60 = vector.broadcast %cst_6 : f32 to vector<49x384xf32>
    %61 = arith.maximumf %60, %59 : vector<49x384xf32>
    %62 = vector.broadcast %cst_7 : f32 to vector<49x384xf32>
    %63 = arith.minimumf %62, %61 : vector<49x384xf32>
    %64 = arith.subf %59, %63 : vector<49x384xf32>
    %c0_8 = arith.constant 0 : index
    %c0_9 = arith.constant 0 : index
    %65 = vector.load %arg4[%c0_8, %c0_9] : memref<49x49xf32, #tpu.memory_space<vmem>>, vector<49x49xf32>
    %cst_10 = arith.constant dense<0.000000e+00> : vector<49x384xf32>
    %66 = tpu.matmul %65, %64, %cst_10 {dimension_numbers = #tpu.dot_dimension_numbers<[1], [0], [0], [1], [0, 0, 1, 1], [], []>} : vector<49x49xf32>, vector<49x384xf32>, vector<49x384xf32> -> vector<49x384xf32>
    %c0_11 = arith.constant 0 : index
    %c0_12 = arith.constant 0 : index
    %67 = vector.load %arg5[%c0_11, %c0_12] : memref<1x384xf32, #tpu.memory_space<vmem>>, vector<1x384xf32>
    %68 = vector.broadcast %67 : vector<1x384xf32> to vector<49x384xf32>
    %69 = arith.mulf %66, %68 : vector<49x384xf32>
    %cst_13 = arith.constant 0.000000e+00 : f32
    %70 = vector.broadcast %cst_13 : f32 to vector<49x128xf32>
    %c0_14 = arith.constant 0 : index
    %c0_15 = arith.constant 0 : index
    %71 = vector.load %arg8[%c0_14, %c0_15] : memref<49x640xf32, #tpu.memory_space<vmem>>, vector<49x128xf32>
    tpu.vector_store %arg8[%c0_14, %c0_15], %70 {strides = array<i32>} : memref<49x640xf32, #tpu.memory_space<vmem>>, vector<49x128xf32>,
    %cst_16 = arith.constant 0.000000e+00 : f32
    %72 = vector.broadcast %cst_16 : f32 to vector<49x128xf32>
    %c0_17 = arith.constant 0 : index
    %c512 = arith.constant 512 : index
    %73 = vector.load %arg8[%c0_17, %c512] : memref<49x640xf32, #tpu.memory_space<vmem>>, vector<49x128xf32>
    tpu.vector_store %arg8[%c0_17, %c512], %72 {strides = array<i32>} : memref<49x640xf32, #tpu.memory_space<vmem>>, vector<49x128xf32>,
    %c0_18 = arith.constant 0 : index
    %c128 = arith.constant 128 : index
    %74 = vector.load %arg8[%c0_18, %c128] : memref<49x640xf32, #tpu.memory_space<vmem>>, vector<49x384xf32>
    tpu.vector_store %arg8[%c0_18, %c128], %69 {strides = array<i32>} : memref<49x640xf32, #tpu.memory_space<vmem>>, vector<49x384xf32>,
    %c0_19 = arith.constant 0 : index
    %c59 = arith.constant 59 : index
    %75 = vector.load %arg8[%c0_19, %c59] : memref<49x640xf32, #tpu.memory_space<vmem>>, vector<1x384xf32>
    %c1 = arith.constant 1 : index
    %c60 = arith.constant 60 : index
    %76 = vector.load %arg8[%c1, %c60] : memref<49x640xf32, #tpu.memory_space<vmem>>, vector<1x384xf32>
    %c2 = arith.constant 2 : index
    %c61 = arith.constant 61 : index
    %77 = vector.load %arg8[%c2, %c61] : memref<49x640xf32, #tpu.memory_space<vmem>>, vector<1x384xf32>
    %c3 = arith.constant 3 : index
    %c62 = arith.constant 62 : index
    %78 = vector.load %arg8[%c3, %c62] : memref<49x640xf32, #tpu.memory_space<vmem>>, vector<1x384xf32>
    %c4 = arith.constant 4 : index
    %c63 = arith.constant 63 : index
    %79 = vector.load %arg8[%c4, %c63] : memref<49x640xf32, #tpu.memory_space<vmem>>, vector<1x384xf32>
    %c5 = arith.constant 5 : index
    %c64 = arith.constant 64 : index
    %80 = vector.load %arg8[%c5, %c64] : memref<49x640xf32, #tpu.memory_space<vmem>>, vector<1x384xf32>
    %c6 = arith.constant 6 : index
    %c65 = arith.constant 65 : index
    %81 = vector.load %arg8[%c6, %c65] : memref<49x640xf32, #tpu.memory_space<vmem>>, vector<1x384xf32>
    %c7 = arith.constant 7 : index
    %c81 = arith.constant 81 : index
    %82 = vector.load %arg8[%c7, %c81] : memref<49x640xf32, #tpu.memory_space<vmem>>, vector<1x384xf32>
    %c8 = arith.constant 8 : index
    %c82 = arith.constant 82 : index
    %83 = vector.load %arg8[%c8, %c82] : memref<49x640xf32, #tpu.memory_space<vmem>>, vector<1x384xf32>
    %84 = arith.addf %75, %83 : vector<1x384xf32>
    %c9 = arith.constant 9 : index
    %c83 = arith.constant 83 : index
    %85 = vector.load %arg8[%c9, %c83] : memref<49x640xf32, #tpu.memory_space<vmem>>, vector<1x384xf32>
    %86 = arith.addf %76, %85 : vector<1x384xf32>
    %c10 = arith.constant 10 : index
    %c84 = arith.constant 84 : index
    %87 = vector.load %arg8[%c10, %c84] : memref<49x640xf32, #tpu.memory_space<vmem>>, vector<1x384xf32>
    %88 = arith.addf %77, %87 : vector<1x384xf32>
    %c11 = arith.constant 11 : index
    %c85 = arith.constant 85 : index
    %89 = vector.load %arg8[%c11, %c85] : memref<49x640xf32, #tpu.memory_space<vmem>>, vector<1x384xf32>
    %90 = arith.addf %78, %89 : vector<1x384xf32>
    %c12 = arith.constant 12 : index
    %c86 = arith.constant 86 : index
    %91 = vector.load %arg8[%c12, %c86] : memref<49x640xf32, #tpu.memory_space<vmem>>, vector<1x384xf32>
    %92 = arith.addf %79, %91 : vector<1x384xf32>
    %c13 = arith.constant 13 : index
    %c87 = arith.constant 87 : index
    %93 = vector.load %arg8[%c13, %c87] : memref<49x640xf32, #tpu.memory_space<vmem>>, vector<1x384xf32>
    %94 = arith.addf %80, %93 : vector<1x384xf32>
    %c14 = arith.constant 14 : index
    %c103 = arith.constant 103 : index
    %95 = vector.load %arg8[%c14, %c103] : memref<49x640xf32, #tpu.memory_space<vmem>>, vector<1x384xf32>
    %96 = arith.addf %81, %95 : vector<1x384xf32>
    %c15 = arith.constant 15 : index
    %c104 = arith.constant 104 : index
    %97 = vector.load %arg8[%c15, %c104] : memref<49x640xf32, #tpu.memory_space<vmem>>, vector<1x384xf32>
    %98 = arith.addf %82, %97 : vector<1x384xf32>
    %c16 = arith.constant 16 : index
    %c105 = arith.constant 105 : index
    %99 = vector.load %arg8[%c16, %c105] : memref<49x640xf32, #tpu.memory_space<vmem>>, vector<1x384xf32>
    %100 = arith.addf %84, %99 : vector<1x384xf32>
    %c17 = arith.constant 17 : index
    %c106 = arith.constant 106 : index
    %101 = vector.load %arg8[%c17, %c106] : memref<49x640xf32, #tpu.memory_space<vmem>>, vector<1x384xf32>
    %102 = arith.addf %86, %101 : vector<1x384xf32>
    %c18 = arith.constant 18 : index
    %c107 = arith.constant 107 : index
    %103 = vector.load %arg8[%c18, %c107] : memref<49x640xf32, #tpu.memory_space<vmem>>, vector<1x384xf32>
    %104 = arith.addf %88, %103 : vector<1x384xf32>
    %c19 = arith.constant 19 : index
    %c108 = arith.constant 108 : index
    %105 = vector.load %arg8[%c19, %c108] : memref<49x640xf32, #tpu.memory_space<vmem>>, vector<1x384xf32>
    %106 = arith.addf %90, %105 : vector<1x384xf32>
    %c20 = arith.constant 20 : index
    %c109 = arith.constant 109 : index
    %107 = vector.load %arg8[%c20, %c109] : memref<49x640xf32, #tpu.memory_space<vmem>>, vector<1x384xf32>
    %108 = arith.addf %92, %107 : vector<1x384xf32>
    %c21 = arith.constant 21 : index
    %c125 = arith.constant 125 : index
    %109 = vector.load %arg8[%c21, %c125] : memref<49x640xf32, #tpu.memory_space<vmem>>, vector<1x384xf32>
    %110 = arith.addf %94, %109 : vector<1x384xf32>
    %c22 = arith.constant 22 : index
    %c126 = arith.constant 126 : index
    %111 = vector.load %arg8[%c22, %c126] : memref<49x640xf32, #tpu.memory_space<vmem>>, vector<1x384xf32>
    %112 = arith.addf %96, %111 : vector<1x384xf32>
    %c23 = arith.constant 23 : index
    %c127 = arith.constant 127 : index
    %113 = vector.load %arg8[%c23, %c127] : memref<49x640xf32, #tpu.memory_space<vmem>>, vector<1x384xf32>
    %114 = arith.addf %98, %113 : vector<1x384xf32>
    %c24 = arith.constant 24 : index
    %c128_20 = arith.constant 128 : index
    %115 = vector.load %arg8[%c24, %c128_20] : memref<49x640xf32, #tpu.memory_space<vmem>>, vector<1x384xf32>
    %116 = arith.addf %100, %115 : vector<1x384xf32>
    %c25 = arith.constant 25 : index
    %c129 = arith.constant 129 : index
    %117 = vector.load %arg8[%c25, %c129] : memref<49x640xf32, #tpu.memory_space<vmem>>, vector<1x384xf32>
    %118 = arith.addf %102, %117 : vector<1x384xf32>
    %c26 = arith.constant 26 : index
    %c130 = arith.constant 130 : index
    %119 = vector.load %arg8[%c26, %c130] : memref<49x640xf32, #tpu.memory_space<vmem>>, vector<1x384xf32>
    %120 = arith.addf %104, %119 : vector<1x384xf32>
    %c27 = arith.constant 27 : index
    %c131 = arith.constant 131 : index
    %121 = vector.load %arg8[%c27, %c131] : memref<49x640xf32, #tpu.memory_space<vmem>>, vector<1x384xf32>
    %122 = arith.addf %106, %121 : vector<1x384xf32>
    %c28 = arith.constant 28 : index
    %c147 = arith.constant 147 : index
    %123 = vector.load %arg8[%c28, %c147] : memref<49x640xf32, #tpu.memory_space<vmem>>, vector<1x384xf32>
    %124 = arith.addf %108, %123 : vector<1x384xf32>
    %c29 = arith.constant 29 : index
    %c148 = arith.constant 148 : index
    %125 = vector.load %arg8[%c29, %c148] : memref<49x640xf32, #tpu.memory_space<vmem>>, vector<1x384xf32>
    %126 = arith.addf %110, %125 : vector<1x384xf32>
    %c30 = arith.constant 30 : index
    %c149 = arith.constant 149 : index
    %127 = vector.load %arg8[%c30, %c149] : memref<49x640xf32, #tpu.memory_space<vmem>>, vector<1x384xf32>
    %128 = arith.addf %112, %127 : vector<1x384xf32>
    %c31 = arith.constant 31 : index
    %c150 = arith.constant 150 : index
    %129 = vector.load %arg8[%c31, %c150] : memref<49x640xf32, #tpu.memory_space<vmem>>, vector<1x384xf32>
    %130 = arith.addf %114, %129 : vector<1x384xf32>
    %c32 = arith.constant 32 : index
    %c151 = arith.constant 151 : index
    %131 = vector.load %arg8[%c32, %c151] : memref<49x640xf32, #tpu.memory_space<vmem>>, vector<1x384xf32>
    %132 = arith.addf %116, %131 : vector<1x384xf32>
    %c33 = arith.constant 33 : index
    %c152 = arith.constant 152 : index
    %133 = vector.load %arg8[%c33, %c152] : memref<49x640xf32, #tpu.memory_space<vmem>>, vector<1x384xf32>
    %134 = arith.addf %118, %133 : vector<1x384xf32>
    %c34 = arith.constant 34 : index
    %c153 = arith.constant 153 : index
    %135 = vector.load %arg8[%c34, %c153] : memref<49x640xf32, #tpu.memory_space<vmem>>, vector<1x384xf32>
    %136 = arith.addf %120, %135 : vector<1x384xf32>
    %c35 = arith.constant 35 : index
    %c169 = arith.constant 169 : index
    %137 = vector.load %arg8[%c35, %c169] : memref<49x640xf32, #tpu.memory_space<vmem>>, vector<1x384xf32>
    %138 = arith.addf %122, %137 : vector<1x384xf32>
    %c36 = arith.constant 36 : index
    %c170 = arith.constant 170 : index
    %139 = vector.load %arg8[%c36, %c170] : memref<49x640xf32, #tpu.memory_space<vmem>>, vector<1x384xf32>
    %140 = arith.addf %124, %139 : vector<1x384xf32>
    %c37 = arith.constant 37 : index
    %c171 = arith.constant 171 : index
    %141 = vector.load %arg8[%c37, %c171] : memref<49x640xf32, #tpu.memory_space<vmem>>, vector<1x384xf32>
    %142 = arith.addf %126, %141 : vector<1x384xf32>
    %c38 = arith.constant 38 : index
    %c172 = arith.constant 172 : index
    %143 = vector.load %arg8[%c38, %c172] : memref<49x640xf32, #tpu.memory_space<vmem>>, vector<1x384xf32>
    %144 = arith.addf %128, %143 : vector<1x384xf32>
    %c39 = arith.constant 39 : index
    %c173 = arith.constant 173 : index
    %145 = vector.load %arg8[%c39, %c173] : memref<49x640xf32, #tpu.memory_space<vmem>>, vector<1x384xf32>
    %146 = arith.addf %130, %145 : vector<1x384xf32>
    %c40 = arith.constant 40 : index
    %c174 = arith.constant 174 : index
    %147 = vector.load %arg8[%c40, %c174] : memref<49x640xf32, #tpu.memory_space<vmem>>, vector<1x384xf32>
    %148 = arith.addf %132, %147 : vector<1x384xf32>
    %c41 = arith.constant 41 : index
    %c175 = arith.constant 175 : index
    %149 = vector.load %arg8[%c41, %c175] : memref<49x640xf32, #tpu.memory_space<vmem>>, vector<1x384xf32>
    %150 = arith.addf %134, %149 : vector<1x384xf32>
    %c42 = arith.constant 42 : index
    %c191 = arith.constant 191 : index
    %151 = vector.load %arg8[%c42, %c191] : memref<49x640xf32, #tpu.memory_space<vmem>>, vector<1x384xf32>
    %152 = arith.addf %136, %151 : vector<1x384xf32>
    %c43 = arith.constant 43 : index
    %c192 = arith.constant 192 : index
    %153 = vector.load %arg8[%c43, %c192] : memref<49x640xf32, #tpu.memory_space<vmem>>, vector<1x384xf32>
    %154 = arith.addf %138, %153 : vector<1x384xf32>
    %c44 = arith.constant 44 : index
    %c193 = arith.constant 193 : index
    %155 = vector.load %arg8[%c44, %c193] : memref<49x640xf32, #tpu.memory_space<vmem>>, vector<1x384xf32>
    %156 = arith.addf %140, %155 : vector<1x384xf32>
    %c45 = arith.constant 45 : index
    %c194 = arith.constant 194 : index
    %157 = vector.load %arg8[%c45, %c194] : memref<49x640xf32, #tpu.memory_space<vmem>>, vector<1x384xf32>
    %158 = arith.addf %142, %157 : vector<1x384xf32>
    %c46 = arith.constant 46 : index
    %c195 = arith.constant 195 : index
    %159 = vector.load %arg8[%c46, %c195] : memref<49x640xf32, #tpu.memory_space<vmem>>, vector<1x384xf32>
    %160 = arith.addf %144, %159 : vector<1x384xf32>
    %c47 = arith.constant 47 : index
    %c196 = arith.constant 196 : index
    %161 = vector.load %arg8[%c47, %c196] : memref<49x640xf32, #tpu.memory_space<vmem>>, vector<1x384xf32>
    %162 = arith.addf %146, %161 : vector<1x384xf32>
    %c48 = arith.constant 48 : index
    %c197 = arith.constant 197 : index
    %163 = vector.load %arg8[%c48, %c197] : memref<49x640xf32, #tpu.memory_space<vmem>>, vector<1x384xf32>
    %164 = arith.addf %148, %163 : vector<1x384xf32>
    %165 = arith.addf %164, %150 : vector<1x384xf32>
    %166 = arith.addf %152, %154 : vector<1x384xf32>
    %167 = arith.addf %165, %166 : vector<1x384xf32>
    %168 = arith.addf %156, %158 : vector<1x384xf32>
    %169 = arith.addf %160, %162 : vector<1x384xf32>
    %170 = arith.addf %168, %169 : vector<1x384xf32>
    %171 = arith.addf %167, %170 : vector<1x384xf32>
    %172 = vector.extract_strided_slice %1 {offsets = [0, 69], sizes = [1, 384], strides = [1, 1]} : vector<1x522xf32> to vector<1x384xf32>
    %173 = arith.addf %172, %171 : vector<1x384xf32>
    %c0_21 = arith.constant 0 : index
    %c0_22 = arith.constant 0 : index
    %174 = vector.load %arg6[%c0_21, %c0_22] : memref<1x1xf32, #tpu.memory_space<vmem>>, vector<1x1xf32>
    %175 = vector.broadcast %174 : vector<1x1xf32> to vector<1x384xf32>
    %176 = arith.addf %173, %175 : vector<1x384xf32>
    %c0_23 = arith.constant 0 : index
    %c0_24 = arith.constant 0 : index
    %c0_25 = arith.constant 0 : index
    %177 = vector.load %arg7[%c0_23, %c0_24, %c0_25] : memref<1x1x384xf32, #tpu.memory_space<vmem>>, vector<1x1x384xf32>
    %178 = vector.shape_cast %177 : vector<1x1x384xf32> to vector<1x384xf32>
    %179 = vector.shape_cast %176 : vector<1x384xf32> to vector<1x1x384xf32>
    tpu.vector_store %arg7[%c0_23, %c0_24, %c0_25], %179 {strides = array<i32>} : memref<1x1x384xf32, #tpu.memory_space<vmem>>, vector<1x1x384xf32>,
    return
  }
  func.func @transform_0(%arg0: i32) -> (i32, i32, i32) {
    %c0_i32 = arith.constant 0 : i32
    %c0_i32_0 = arith.constant 0 : i32
    %c0_i32_1 = arith.constant 0 : i32
    return %arg0, %c0_i32, %c0_i32_0 : i32, i32, i32
  }
  func.func @transform_1(%arg0: i32) -> (i32, i32) {
    %c0_i32 = arith.constant 0 : i32
    %c0_i32_0 = arith.constant 0 : i32
    %c0_i32_1 = arith.constant 0 : i32
    return %c0_i32, %c0_i32_0 : i32, i32
  }
  func.func @transform_2(%arg0: i32) -> (i32, i32) {
    %c0_i32 = arith.constant 0 : i32
    %c0_i32_0 = arith.constant 0 : i32
    %c0_i32_1 = arith.constant 0 : i32
    return %c0_i32, %c0_i32_0 : i32, i32
  }
  func.func @transform_3(%arg0: i32) -> (i32, i32) {
    %c0_i32 = arith.constant 0 : i32
    %c0_i32_0 = arith.constant 0 : i32
    %c0_i32_1 = arith.constant 0 : i32
    return %c0_i32, %c0_i32_0 : i32, i32
  }
  func.func @transform_4(%arg0: i32) -> (i32, i32) {
    %c0_i32 = arith.constant 0 : i32
    %c0_i32_0 = arith.constant 0 : i32
    %c0_i32_1 = arith.constant 0 : i32
    return %c0_i32, %c0_i32_0 : i32, i32
  }
  func.func @transform_5(%arg0: i32) -> (i32, i32) {
    %c0_i32 = arith.constant 0 : i32
    %c0_i32_0 = arith.constant 0 : i32
    %c0_i32_1 = arith.constant 0 : i32
    return %c0_i32, %c0_i32_0 : i32, i32
  }
  func.func @transform_6(%arg0: i32) -> (i32, i32, i32) {
    %c0_i32 = arith.constant 0 : i32
    %c0_i32_0 = arith.constant 0 : i32
    %c0_i32_1 = arith.constant 0 : i32
    return %arg0, %c0_i32, %c0_i32_0 : i32, i32, i32
  }
}

</mosaic_0001>

<llo_original>
// kernel: squeeze.5
$region0: #{squeeze.5}
  %s0 = inlined_call_operand.vmem [shape: f32[2,352], index: 0, kind: input, shape index: {}]
  %s1 = inlined_call_operand.vmem [shape: f32[2,16,22], index: 1, kind: output, shape index: {}]
  $region1: #{squeeze.5} parent=0
    #allocation0 [shape = 'u8[12288]{0}', space=vmem, size = 0x3000, scoped, tag = 'scoped mem for input reshape']
    %s3 = sshllo.u32 0, 2
    %s4 = smul.addr 2, 2
    %s5 = scalar_lea.vmem %s0, %s4
    %v6 = vld [vmem:[%s5] sm:%s3]
    %s7 = scalar_lea.vmem [#allocation0], 16
    %8 = vst [vmem:[%s7] sm:%s3] %v6
    %s9 = scalar_lea.vmem %s0, 2
    %v10 = vld [vmem:[%s9] sm:%s3]
    %s11 = scalar_lea.vmem [#allocation0], 8
    %12 = vst [vmem:[%s11] sm:%s3] %v10
    %v13 = vld [vmem:[%s0] sm:%s3]
    %14 = vst [vmem:[#allocation0] sm:%s3] %v13
    %v15 = vld [vmem:[#allocation0] sm:$0x3]
    %vm16 = vcmask 179200
    %17 = vst.msk [vmem:[%s1] ss:$16 sm:$0x3] %vm16, %v15
    %s18 = scalar_lea.vmem [#allocation0], 8
    %v19 = vld [vmem:[%s18] sm:$0x3]
    %20 = vrot.lane.b32.xlu0 %v19, 124
    %v21 = vpop.permute.xlu0 %20
    %vm22 = vcmask 179200
    %s23 = scalar_lea.vmem %s1, 6
    %24 = vst.msk [vmem:[%s23] ss:$16 sm:$0x3] %vm22, %v21
    %s25 = scalar_lea.vmem [#allocation0], 16
    %v26 = vld [vmem:[%s25] sm:$0x3]
    %27 = vrot.lane.b32.xlu0 %v26, 120
    %v28 = vpop.permute.xlu0 %27
    %vm29 = vcmask 179200
    %s30 = scalar_lea.vmem %s1, 12
    %31 = vst.msk [vmem:[%s30] ss:$16 sm:$0x3] %vm29, %v28
    %v32 = vld [vmem:[#allocation0] sm:$0x3]
    %33 = vrot.lane.b32.xlu0 %v32, 106
    %v34 = vpop.permute.xlu0 %33
    %vm35 = vcmask 179200
    %s36 = scalar_lea.vmem %s1, 1
    %37 = vst.msk [vmem:[%s36] ss:$16 sm:$0x3] %vm35, %v34
    %s38 = scalar_lea.vmem [#allocation0], 8
    %v39 = vld [vmem:[%s38] sm:$0x3]
    %40 = vrot.lane.b32.xlu0 %v39, 102
    %v41 = vpop.permute.xlu0 %40
    %vm42 = vcmask 179200
    %s43 = scalar_lea.vmem %s1, 7
    %44 = vst.msk [vmem:[%s43] ss:$16 sm:$0x3] %vm42, %v41
    %s45 = scalar_lea.vmem [#allocation0], 16
    %v46 = vld [vmem:[%s45] sm:$0x3]
    %47 = vrot.lane.b32.xlu0 %v46, 98
    %v48 = vpop.permute.xlu0 %47
    %vm49 = vcmask 179200
    %s50 = scalar_lea.vmem %s1, 13
    %51 = vst.msk [vmem:[%s50] ss:$16 sm:$0x3] %vm49, %v48
    %v52 = vld [vmem:[#allocation0] sm:$0x3]
    %53 = vrot.lane.b32.xlu0 %v52, 84
    %v54 = vpop.permute.xlu0 %53
    %vm55 = vcmask 179200
    %s56 = scalar_lea.vmem %s1, 2
    %57 = vst.msk [vmem:[%s56] ss:$16 sm:$0x3] %vm55, %v54
    %s58 = scalar_lea.vmem [#allocation0], 8
    %v59 = vld [vmem:[%s58] sm:$0x3]
    %60 = vrot.lane.b32.xlu0 %v59, 80
    %v61 = vpop.permute.xlu0 %60
    %vm62 = vcmask 179200
    %s63 = scalar_lea.vmem %s1, 8
    %64 = vst.msk [vmem:[%s63] ss:$16 sm:$0x3] %vm62, %v61
    %s65 = scalar_lea.vmem [#allocation0], 16
    %v66 = vld [vmem:[%s65] sm:$0x3]
    %67 = vrot.lane.b32.xlu0 %v66, 76
    %v68 = vpop.permute.xlu0 %67
    %vm69 = vcmask 179200
    %s70 = scalar_lea.vmem %s1, 14
    %71 = vst.msk [vmem:[%s70] ss:$16 sm:$0x3] %vm69, %v68
    %v72 = vld [vmem:[#allocation0] sm:$0x3]
    %73 = vrot.lane.b32.xlu0 %v72, 62
    %v74 = vpop.permute.xlu0 %73
    %vm75 = vcmask 179200
    %s76 = scalar_lea.vmem %s1, 3
    %77 = vst.msk [vmem:[%s76] ss:$16 sm:$0x3] %vm75, %v74
    %s78 = scalar_lea.vmem [#allocation0], 8
    %v79 = vld [vmem:[%s78] sm:$0x3]
    %80 = vrot.lane.b32.xlu0 %v79, 58
    %v81 = vpop.permute.xlu0 %80
    %vm82 = vcmask 179200
    %s83 = scalar_lea.vmem %s1, 9
    %84 = vst.msk [vmem:[%s83] ss:$16 sm:$0x3] %vm82, %v81
    %s85 = scalar_lea.vmem [#allocation0], 16
    %v86 = vld [vmem:[%s85] sm:$0x3]
    %87 = vrot.lane.b32.xlu0 %v86, 54
    %v88 = vpop.permute.xlu0 %87
    %vm89 = vcmask 179200
    %s90 = scalar_lea.vmem %s1, 15
    %91 = vst.msk [vmem:[%s90] ss:$16 sm:$0x3] %vm89, %v88
    %v92 = vld [vmem:[#allocation0] sm:$0x3]
    %93 = vrot.lane.b32.xlu0 %v92, 40
    %v94 = vpop.permute.xlu0 %93
    %vm95 = vcmask 179200
    %s96 = scalar_lea.vmem %s1, 4
    %97 = vst.msk [vmem:[%s96] ss:$16 sm:$0x3] %vm95, %v94
    %s98 = scalar_lea.vmem [#allocation0], 8
    %v99 = vld [vmem:[%s98] sm:$0x3]
    %100 = vrot.lane.b32.xlu0 %v99, 36
    %v101 = vpop.permute.xlu0 %100
    %vm102 = vcmask 179200
    %s103 = scalar_lea.vmem %s1, 10
    %104 = vst.msk [vmem:[%s103] ss:$16 sm:$0x3] %vm102, %v101
    %v105 = vld [vmem:[#allocation0] sm:$0x3]
    %s106 = scalar_lea.vmem [#allocation0], 8
    %v107 = vld [vmem:[%s106] sm:$0x3]
    %vm108 = vcmask 900096
    %v109 = vsel %vm108, %v107, %v105
    %110 = vrot.lane.b32.xlu0 %v109, 18
    %v111 = vpop.permute.xlu0 %110
    %vm112 = vcmask 146432
    %s113 = scalar_lea.vmem %s1, 5
    %114 = vst.msk [vmem:[%s113] ss:$16 sm:$0x3] %vm112, %v111
    %vm115 = vcmask 179344
    %s116 = scalar_lea.vmem %s1, 5
    %117 = vst.msk [vmem:[%s116] ss:$16 sm:$0x3] %vm115, %v111
    %s118 = scalar_lea.vmem [#allocation0], 8
    %v119 = vld [vmem:[%s118] sm:$0x3]
    %s120 = scalar_lea.vmem [#allocation0], 16
    %v121 = vld [vmem:[%s120] sm:$0x3]
    %vm122 = vcmask 932864
    %v123 = vsel %vm122, %v121, %v119
    %124 = vrot.lane.b32.xlu0 %v123, 14
    %v125 = vpop.permute.xlu0 %124
    %vm126 = vcmask 113664
    %s127 = scalar_lea.vmem %s1, 11
    %128 = vst.msk [vmem:[%s127] ss:$16 sm:$0x3] %vm126, %v125
    %vm129 = vcmask 179312
    %s130 = scalar_lea.vmem %s1, 11
    %131 = vst.msk [vmem:[%s130] ss:$16 sm:$0x3] %vm129, %v125

// kernel: dct_forward.1
$region0: #{dct_forward.1}
  #allocation0 [shape = 'u32[]', space=smem, size = 0x4, offset = 0x4, fixed_abs, tag = 'smem constant byte address 0x4 - core index']
  #allocation1 [shape = 'u32[144,128]{1,0:T(1,128)}', space=vmem, size = 0x12000, scoped, tag = 'internal scratch']
  #allocation2 [shape = 'f32[49,640]{1,0:T(8,128)}', space=vmem, size = 0x23000, scoped, tag = 'scratch operand']
  #allocation3 [shape = 'f32[1,1]{1,0:T(1,128)S(1)}', space=vmem, size = 0x200, scoped, tag = 'scoped memory for dct_forward.1']
  %s0 = inlined_call_operand.vmem [shape: f32[2,1,522], index: 0, kind: input, shape index: {}]
  %s1 = inlined_call_operand.vmem [shape: f32[49,49], index: 1, kind: input, shape index: {}]
  %s2 = inlined_call_operand.vmem [shape: f32[49,1], index: 2, kind: input, shape index: {}]
  %s3 = inlined_call_operand.vmem [shape: f32[49,49], index: 3, kind: input, shape index: {}]
  %s4 = inlined_call_operand.vmem [shape: f32[1,384], index: 4, kind: input, shape index: {}]
  %s5 = inlined_call_operand.<no memory space> [shape: f32[1,1], index: 5, kind: input, shape index: {}]
  %s6 = inlined_call_operand.vmem [shape: f32[2,1,384], index: 6, kind: output, shape index: {}]
  %s7 = sld [smem:[#allocation0]]
  $region57: #{dct_forward.1} parent=0
    _
  %s9 = ssub.s32 1, %s7
  %s10 = scalar_select 0, %s9, %s7
  %v11 = vstv %s5
  %12 = vst [vmem:[#allocation3] sm:$0x1] %v11
  loop: start=0, step=1, limit=4
  $region2: #{dct_forward.1} parent=0 // loop_pre_header
    _
  $region3: #{dct_forward.1} parent=0 // loop_header
    %s14 = sphi 0, %s18
    %p15 = scmp.ge.s32.totalorder %s14, 4
    %s24 = sphi 0, %s26
    %s27 = sphi 0, %s24
    %s28 = sphi 0, %s27
    %s44 = sphi 0, %s28
    %s48 = sphi 0, %s48
    %s50 = sphi 0, %s48
    %s51 = sphi 0, %s50
    %s65 = sphi 0, %s51
    %s69 = sphi 0, %s69
    %s71 = sphi 0, %s69
    %s72 = sphi 0, %s71
    %s86 = sphi 0, %s72
    %s90 = sphi 0, %s90
    %s92 = sphi 0, %s90
    %s93 = sphi 0, %s92
    %s107 = sphi 0, %s93
    %s111 = sphi 0, %s111
    %s113 = sphi 0, %s111
    %s114 = sphi 0, %s113
    %s128 = sphi 0, %s114
    %s132 = sphi 0, %s132
    %s134 = sphi 0, %s132
    %s135 = sphi 0, %s134
    %s149 = sphi 0, %s135
    %s155 = sphi 0, %s157
    %s158 = sphi 0, %s155
    %s159 = sphi 0, %s158
    %s175 = sphi 0, %s159
  $region4: #{dct_forward.1} parent=0 // loop_header_branch
    %17 = sbr.rel (%p15) target = $region8
  $region5: #{dct_forward.1} parent=0 // loop_body
    %s19 = ssub.s32 %s14, 1
    %s20 = ssub.s32 %s14, 2
    %s21 = sadd.s32 %s14, 1
    %s22 = ssub.s32 %s14, %s21
    %p23 = scmp.eq.s32.totalorder %s22, 0
    %s25 = sadd.s32 %s24, 1
    %s26 = scalar_select %p23, %s24, %s25
    %p29 = pneg %p23
    %p30 = scmp.eq.s32.totalorder %s14, 1
    %p31 = por %p29, %p30
    %p32 = scmp.ne.s32.totalorder %s24, %s27
    %p33 = scmp.eq.s32.totalorder %s14, 0
    %p34 = por %p32, %p33
    %p35 = scmp.ne.s32.totalorder %s24, %s27
    %p36 = scmp.eq.s32.totalorder %s19, 1
    %p37 = por %p35, %p36
    %p38 = scmp.ne.s32.totalorder %s27, %s28
    %p39 = scmp.eq.s32.totalorder %s19, 0
    %p40 = por %p38, %p39
    %p41 = scmp.ne.s32.totalorder %s27, %s28
    %p42 = scmp.eq.s32.totalorder %s20, 1
    %p43 = por %p41, %p42
    %p45 = scmp.ne.s32.totalorder %s28, %s44
    %p46 = scmp.eq.s32.totalorder %s20, 0
    %p47 = por %p45, %p46
    %s49 = sadd.s32 %s48, 1
    %p52 = scmp.eq.s32.totalorder %s14, 1
    %p53 = scmp.ne.s32.totalorder %s48, %s50
    %p54 = scmp.eq.s32.totalorder %s14, 0
    %p55 = por %p53, %p54
    %p56 = scmp.ne.s32.totalorder %s48, %s50
    %p57 = scmp.eq.s32.totalorder %s19, 1
    %p58 = por %p56, %p57
    %p59 = scmp.ne.s32.totalorder %s50, %s51
    %p60 = scmp.eq.s32.totalorder %s19, 0
    %p61 = por %p59, %p60
    %p62 = scmp.ne.s32.totalorder %s50, %s51
    %p63 = scmp.eq.s32.totalorder %s20, 1
    %p64 = por %p62, %p63
    %p66 = scmp.ne.s32.totalorder %s51, %s65
    %p67 = scmp.eq.s32.totalorder %s20, 0
    %p68 = por %p66, %p67
    %s70 = sadd.s32 %s69, 1
    %p73 = scmp.eq.s32.totalorder %s14, 1
    %p74 = scmp.ne.s32.totalorder %s69, %s71
    %p75 = scmp.eq.s32.totalorder %s14, 0
    %p76 = por %p74, %p75
    %p77 = scmp.ne.s32.totalorder %s69, %s71
    %p78 = scmp.eq.s32.totalorder %s19, 1
    %p79 = por %p77, %p78
    %p80 = scmp.ne.s32.totalorder %s71, %s72
    %p81 = scmp.eq.s32.totalorder %s19, 0
    %p82 = por %p80, %p81
    %p83 = scmp.ne.s32.totalorder %s71, %s72
    %p84 = scmp.eq.s32.totalorder %s20, 1
    %p85 = por %p83, %p84
    %p87 = scmp.ne.s32.totalorder %s72, %s86
    %p88 = scmp.eq.s32.totalorder %s20, 0
    %p89 = por %p87, %p88
    %s91 = sadd.s32 %s90, 1
    %p94 = scmp.eq.s32.totalorder %s14, 1
    %p95 = scmp.ne.s32.totalorder %s90, %s92
    %p96 = scmp.eq.s32.totalorder %s14, 0
    %p97 = por %p95, %p96
    %p98 = scmp.ne.s32.totalorder %s90, %s92
    %p99 = scmp.eq.s32.totalorder %s19, 1
    %p100 = por %p98, %p99
    %p101 = scmp.ne.s32.totalorder %s92, %s93
    %p102 = scmp.eq.s32.totalorder %s19, 0
    %p103 = por %p101, %p102
    %p104 = scmp.ne.s32.totalorder %s92, %s93
    %p105 = scmp.eq.s32.totalorder %s20, 1
    %p106 = por %p104, %p105
    %p108 = scmp.ne.s32.totalorder %s93, %s107
    %p109 = scmp.eq.s32.totalorder %s20, 0
    %p110 = por %p108, %p109
    %s112 = sadd.s32 %s111, 1
    %p115 = scmp.eq.s32.totalorder %s14, 1
    %p116 = scmp.ne.s32.totalorder %s111, %s113
    %p117 = scmp.eq.s32.totalorder %s14, 0
    %p118 = por %p116, %p117
    %p119 = scmp.ne.s32.totalorder %s111, %s113
    %p120 = scmp.eq.s32.totalorder %s19, 1
    %p121 = por %p119, %p120
    %p122 = scmp.ne.s32.totalorder %s113, %s114
    %p123 = scmp.eq.s32.totalorder %s19, 0
    %p124 = por %p122, %p123
    %p125 = scmp.ne.s32.totalorder %s113, %s114
    %p126 = scmp.eq.s32.totalorder %s20, 1
    %p127 = por %p125, %p126
    %p129 = scmp.ne.s32.totalorder %s114, %s128
    %p130 = scmp.eq.s32.totalorder %s20, 0
    %p131 = por %p129, %p130
    %s133 = sadd.s32 %s132, 1
    %p136 = scmp.eq.s32.totalorder %s14, 1
    %p137 = scmp.ne.s32.totalorder %s132, %s134
    %p138 = scmp.eq.s32.totalorder %s14, 0
    %p139 = por %p137, %p138
    %p140 = scmp.ne.s32.totalorder %s132, %s134
    %p141 = scmp.eq.s32.totalorder %s19, 1
    %p142 = por %p140, %p141
    %p143 = scmp.ne.s32.totalorder %s134, %s135
    %p144 = scmp.eq.s32.totalorder %s19, 0
    %p145 = por %p143, %p144
    %p146 = scmp.ne.s32.totalorder %s134, %s135
    %p147 = scmp.eq.s32.totalorder %s20, 1
    %p148 = por %p146, %p147
    %p150 = scmp.ne.s32.totalorder %s135, %s149
    %p151 = scmp.eq.s32.totalorder %s20, 0
    %p152 = por %p150, %p151
    %s153 = ssub.s32 %s14, %s21
    %p154 = scmp.eq.s32.totalorder %s153, 0
    %s156 = sadd.s32 %s155, 1
    %s157 = scalar_select %p154, %s155, %s156
    %p160 = pneg %p154
    %p161 = scmp.eq.s32.totalorder %s14, 1
    %p162 = por %p160, %p161
    %p163 = scmp.ne.s32.totalorder %s155, %s158
    %p164 = scmp.eq.s32.totalorder %s14, 0
    %p165 = por %p163, %p164
    %p166 = scmp.ne.s32.totalorder %s155, %s158
    %p167 = scmp.eq.s32.totalorder %s19, 1
    %p168 = por %p166, %p167
    %p169 = scmp.ne.s32.totalorder %s158, %s159
    %p170 = scmp.eq.s32.totalorder %s19, 0
    %p171 = por %p169, %p170
    %p172 = scmp.ne.s32.totalorder %s158, %s159
    %p173 = scmp.eq.s32.totalorder %s20, 1
    %p174 = por %p172, %p173
    %p176 = scmp.ne.s32.totalorder %s159, %s175
    %p177 = scmp.eq.s32.totalorder %s20, 0
    %p178 = por %p176, %p177
    %p179 = scmp.le.s32.totalorder 1, %s14
    %p180 = scmp.lt.s32.totalorder %s14, 3
    %p181 = pnand %p179, %p180
    %p182 = pneg %p181
    // Predicated region
    $region9: #{dct_forward.1} parent=5 // pred_check
      _
    $region10: #{dct_forward.1} parent=5 // pred_check_branch
      %184 = sbr.rel (%p181) target = $region12
    $region11: #{dct_forward.1} parent=5 // pred_region
      %s185 = ssub.s32 %s14, 1
      // Predicated region
      $region13: #{dct_forward.1} parent=11 // pred_check
        %p186 = pneg %p61
      $region14: #{dct_forward.1} parent=11 // pred_check_branch
        %188 = sbr.rel (%p186) target = $region16
      $region15: #{dct_forward.1} parent=11 // pred_region
        _
      $region16: #{dct_forward.1} parent=11 // pred_fallthru
        _
      // Predicated region
      $region17: #{dct_forward.1} parent=11 // pred_check
        %p189 = pneg %p82
      $region18: #{dct_forward.1} parent=11 // pred_check_branch
        %191 = sbr.rel (%p189) target = $region20
      $region19: #{dct_forward.1} parent=11 // pred_region
        _
      $region20: #{dct_forward.1} parent=11 // pred_fallthru
        _
      // Predicated region
      $region21: #{dct_forward.1} parent=11 // pred_check
        %p192 = pneg %p103
      $region22: #{dct_forward.1} parent=11 // pred_check_branch
        %194 = sbr.rel (%p192) target = $region24
      $region23: #{dct_forward.1} parent=11 // pred_region
        _
      $region24: #{dct_forward.1} parent=11 // pred_fallthru
        _
      // Predicated region
      $region25: #{dct_forward.1} parent=11 // pred_check
        %p195 = pneg %p124
      $region26: #{dct_forward.1} parent=11 // pred_check_branch
        %197 = sbr.rel (%p195) target = $region28
      $region27: #{dct_forward.1} parent=11 // pred_region
        _
      $region28: #{dct_forward.1} parent=11 // pred_fallthru
        _
      // Predicated region
      $region29: #{dct_forward.1} parent=11 // pred_check
        %p198 = pneg %p145
      $region30: #{dct_forward.1} parent=11 // pred_check_branch
        %200 = sbr.rel (%p198) target = $region32
      $region31: #{dct_forward.1} parent=11 // pred_region
        _
      $region32: #{dct_forward.1} parent=11 // pred_fallthru
        _
    $region12: #{dct_forward.1} parent=5 // pred_fallthru
      _
    %p201 = scmp.lt.s32.totalorder %s14, 2
    // Predicated region
    $region33: #{dct_forward.1} parent=5 // pred_check
      %p202 = pneg %p201
    $region34: #{dct_forward.1} parent=5 // pred_check_branch
      %204 = sbr.rel (%p202) target = $region36
    $region35: #{dct_forward.1} parent=5 // pred_region
      // Predicated region
      $region37: #{dct_forward.1} parent=35 // pred_check
        %p205 = pneg %p34
      $region38: #{dct_forward.1} parent=35 // pred_check_branch
        %207 = sbr.rel (%p205) target = $region40
      $region39: #{dct_forward.1} parent=35 // pred_region
        %p208 = scmp.lt.s32.totalorder %s14, 1
        %s209 = scalar_select %p208, %s14, 1
        %s210 = smul.addr %s209, 5
        %s211 = scalar_lea.vmem %s0, %s210
      $region40: #{dct_forward.1} parent=35 // pred_fallthru
        _
    $region36: #{dct_forward.1} parent=5 // pred_fallthru
      _
    %p212 = scmp.le.s32.totalorder 1, %s14
    %p213 = scmp.lt.s32.totalorder %s14, 3
    %p214 = pnand %p212, %p213
    %p215 = pneg %p214
    // Predicated region
    $region41: #{dct_forward.1} parent=5 // pred_check
      _
    $region42: #{dct_forward.1} parent=5 // pred_check_branch
      %217 = sbr.rel (%p214) target = $region44
    $region43: #{dct_forward.1} parent=5 // pred_region
      %s218 = ssub.s32 %s14, 1
      %p219 = scmp.lt.s32.totalorder %s19, 1
      %s220 = scalar_select %p219, %s19, 1
      %s221 = smul.addr %s220, 5
      %s222 = scalar_lea.vmem %s0, %s221
      %p223 = pneg %p40
      %p224 = pneg %p37
      %p225 = pneg %p61
      %p226 = pneg %p58
      %p227 = pneg %p82
      %p228 = pneg %p79
      %p229 = pneg %p103
      %p230 = pneg %p100
      %p231 = pneg %p124
      %p232 = pneg %p121
      %p233 = pneg %p145
      %p234 = pneg %p142
      %p235 = pneg %p171
      %p236 = pneg %p168
      %p237 = scmp.lt.s32.totalorder %s19, 1
      %s238 = scalar_select %p237, %s19, 1
      %s239 = smul.addr %s238, 3
      %s240 = scalar_lea.vmem %s6, %s239
      %p241 = scmp.lt.s32.totalorder %s19, 1
      %s242 = scalar_select %p241, %s19, 1
      %s243 = smul.addr %s242, 5
      %s244 = scalar_lea.vmem %s0, %s243
      %p245 = scmp.lt.s32.totalorder %s19, 1
      %s246 = scalar_select %p245, %s19, 1
      %s247 = smul.addr %s246, 3
      %s248 = scalar_lea.vmem %s6, %s247
      %v249 = vld [vmem:[%s244] sm:$0x1f]
      %v251 = vlaneseq
      %v252 = vshrl.u32 %v251, 7
      %v253 = vsub.s32 0, %v252
      %v254 = vrot.slane %v249, %v253
      %v255 = vlaneseq
      %v256 = vshrl.u32 %v255, 7
      %v257 = vsub.s32 1, %v256
      %v258 = vrot.slane %v249, %v257
      %v259 = vlaneseq
      %v260 = vshrl.u32 %v259, 7
      %v261 = vsub.s32 2, %v260
      %v262 = vrot.slane %v249, %v261
      %v266 = vlaneseq
      %v267 = vshrl.u32 %v266, 7
      %v268 = vsub.s32 3, %v267
      %v269 = vrot.slane %v249, %v268
      %270 = vrot.lane.b32.xlu0 %v254, 127
      %v271 = vpop.permute.xlu0 %270
      %272 = vrot.lane.b32.xlu0 %v258, 127
      %v273 = vpop.permute.xlu0 %272
      %274 = vrot.lane.b32.xlu0 %v262, 127
      %v275 = vpop.permute.xlu0 %274
      %276 = vrot.lane.b32.xlu0 %v269, 127
      %v277 = vpop.permute.xlu0 %276
      %vm278 = vcmask 1039360
      %v279 = vsel %vm278, %v271, %v273
      %v280 = vsel %vm278, %v273, %v275
      %v281 = vsel %vm278, %v275, %v277
      %285 = vrot.lane.b32.xlu0 %v254, 126
      %v286 = vpop.permute.xlu0 %285
      %287 = vrot.lane.b32.xlu0 %v258, 126
      %v288 = vpop.permute.xlu0 %287
      %289 = vrot.lane.b32.xlu0 %v262, 126
      %v290 = vpop.permute.xlu0 %289
      %291 = vrot.lane.b32.xlu0 %v269, 126
      %v292 = vpop.permute.xlu0 %291
      %vm293 = vcmask 1031168
      %v294 = vsel %vm293, %v286, %v288
      %v295 = vsel %vm293, %v288, %v290
      %v296 = vsel %vm293, %v290, %v292
      %300 = vrot.lane.b32.xlu0 %v254, 125
      %v301 = vpop.permute.xlu0 %300
      %302 = vrot.lane.b32.xlu0 %v258, 125
      %v303 = vpop.permute.xlu0 %302
      %304 = vrot.lane.b32.xlu0 %v262, 125
      %v305 = vpop.permute.xlu0 %304
      %306 = vrot.lane.b32.xlu0 %v269, 125
      %v307 = vpop.permute.xlu0 %306
      %vm308 = vcmask 1022976
      %v309 = vsel %vm308, %v301, %v303
      %v310 = vsel %vm308, %v303, %v305
      %v311 = vsel %vm308, %v305, %v307
      %315 = vrot.lane.b32.xlu0 %v254, 124
      %v316 = vpop.permute.xlu0 %315
      %317 = vrot.lane.b32.xlu0 %v258, 124
      %v318 = vpop.permute.xlu0 %317
      %319 = vrot.lane.b32.xlu0 %v262, 124
      %v320 = vpop.permute.xlu0 %319
      %321 = vrot.lane.b32.xlu0 %v269, 124
      %v322 = vpop.permute.xlu0 %321
      %vm323 = vcmask 1014784
      %v324 = vsel %vm323, %v316, %v318
      %v325 = vsel %vm323, %v318, %v320
      %v326 = vsel %vm323, %v320, %v322
      %330 = vrot.lane.b32.xlu0 %v254, 123
      %v331 = vpop.permute.xlu0 %330
      %332 = vrot.lane.b32.xlu0 %v258, 123
      %v333 = vpop.permute.xlu0 %332
      %334 = vrot.lane.b32.xlu0 %v262, 123
      %v335 = vpop.permute.xlu0 %334
      %336 = vrot.lane.b32.xlu0 %v269, 123
      %v337 = vpop.permute.xlu0 %336
      %vm338 = vcmask 1006592
      %v339 = vsel %vm338, %v331, %v333
      %v340 = vsel %vm338, %v333, %v335
      %v341 = vsel %vm338, %v335, %v337
      %345 = vrot.lane.b32.xlu0 %v254, 122
      %v346 = vpop.permute.xlu0 %345
      %347 = vrot.lane.b32.xlu0 %v258, 122
      %v348 = vpop.permute.xlu0 %347
      %349 = vrot.lane.b32.xlu0 %v262, 122
      %v350 = vpop.permute.xlu0 %349
      %351 = vrot.lane.b32.xlu0 %v269, 122
      %v352 = vpop.permute.xlu0 %351
      %vm353 = vcmask 998400
      %v354 = vsel %vm353, %v346, %v348
      %v355 = vsel %vm353, %v348, %v350
      %v356 = vsel %vm353, %v350, %v352
      %360 = vrot.lane.b32.xlu0 %v254, 106
      %v361 = vpop.permute.xlu0 %360
      %362 = vrot.lane.b32.xlu0 %v258, 106
      %v363 = vpop.permute.xlu0 %362
      %364 = vrot.lane.b32.xlu0 %v262, 106
      %v365 = vpop.permute.xlu0 %364
      %366 = vrot.lane.b32.xlu0 %v269, 106
      %v367 = vpop.permute.xlu0 %366
      %vm368 = vcmask 867328
      %v369 = vsel %vm368, %v361, %v363
      %v370 = vsel %vm368, %v363, %v365
      %v371 = vsel %vm368, %v365, %v367
      %375 = vrot.lane.b32.xlu0 %v254, 105
      %v376 = vpop.permute.xlu0 %375
      %377 = vrot.lane.b32.xlu0 %v258, 105
      %v378 = vpop.permute.xlu0 %377
      %379 = vrot.lane.b32.xlu0 %v262, 105
      %v380 = vpop.permute.xlu0 %379
      %381 = vrot.lane.b32.xlu0 %v269, 105
      %v382 = vpop.permute.xlu0 %381
      %vm383 = vcmask 859136
      %v384 = vsel %vm383, %v376, %v378
      %v385 = vsel %vm383, %v378, %v380
      %v386 = vsel %vm383, %v380, %v382
      %390 = vrot.lane.b32.xlu0 %v254, 104
      %v391 = vpop.permute.xlu0 %390
      %392 = vrot.lane.b32.xlu0 %v258, 104
      %v393 = vpop.permute.xlu0 %392
      %394 = vrot.lane.b32.xlu0 %v262, 104
      %v395 = vpop.permute.xlu0 %394
      %396 = vrot.lane.b32.xlu0 %v269, 104
      %v397 = vpop.permute.xlu0 %396
      %vm398 = vcmask 850944
      %v399 = vsel %vm398, %v391, %v393
      %v400 = vsel %vm398, %v393, %v395
      %v401 = vsel %vm398, %v395, %v397
      %405 = vrot.lane.b32.xlu0 %v254, 103
      %v406 = vpop.permute.xlu0 %405
      %407 = vrot.lane.b32.xlu0 %v258, 103
      %v408 = vpop.permute.xlu0 %407
      %409 = vrot.lane.b32.xlu0 %v262, 103
      %v410 = vpop.permute.xlu0 %409
      %411 = vrot.lane.b32.xlu0 %v269, 103
      %v412 = vpop.permute.xlu0 %411
      %vm413 = vcmask 842752
      %v414 = vsel %vm413, %v406, %v408
      %v415 = vsel %vm413, %v408, %v410
      %v416 = vsel %vm413, %v410, %v412
      %420 = vrot.lane.b32.xlu0 %v254, 102
      %v421 = vpop.permute.xlu0 %420
      %422 = vrot.lane.b32.xlu0 %v258, 102
      %v423 = vpop.permute.xlu0 %422
      %424 = vrot.lane.b32.xlu0 %v262, 102
      %v425 = vpop.permute.xlu0 %424
      %426 = vrot.lane.b32.xlu0 %v269, 102
      %v427 = vpop.permute.xlu0 %426
      %vm428 = vcmask 834560
      %v429 = vsel %vm428, %v421, %v423
      %v430 = vsel %vm428, %v423, %v425
      %v431 = vsel %vm428, %v425, %v427
      %435 = vrot.lane.b32.xlu0 %v254, 101
      %v436 = vpop.permute.xlu0 %435
      %437 = vrot.lane.b32.xlu0 %v258, 101
      %v438 = vpop.permute.xlu0 %437
      %439 = vrot.lane.b32.xlu0 %v262, 101
      %v440 = vpop.permute.xlu0 %439
      %441 = vrot.lane.b32.xlu0 %v269, 101
      %v442 = vpop.permute.xlu0 %441
      %vm443 = vcmask 826368
      %v444 = vsel %vm443, %v436, %v438
      %v445 = vsel %vm443, %v438, %v440
      %v446 = vsel %vm443, %v440, %v442
      %450 = vrot.lane.b32.xlu0 %v254, 100
      %v451 = vpop.permute.xlu0 %450
      %452 = vrot.lane.b32.xlu0 %v258, 100
      %v453 = vpop.permute.xlu0 %452
      %454 = vrot.lane.b32.xlu0 %v262, 100
      %v455 = vpop.permute.xlu0 %454
      %456 = vrot.lane.b32.xlu0 %v269, 100
      %v457 = vpop.permute.xlu0 %456
      %vm458 = vcmask 818176
      %v459 = vsel %vm458, %v451, %v453
      %v460 = vsel %vm458, %v453, %v455
      %v461 = vsel %vm458, %v455, %v457
      %465 = vrot.lane.b32.xlu0 %v254, 84
      %v466 = vpop.permute.xlu0 %465
      %467 = vrot.lane.b32.xlu0 %v258, 84
      %v468 = vpop.permute.xlu0 %467
      %469 = vrot.lane.b32.xlu0 %v262, 84
      %v470 = vpop.permute.xlu0 %469
      %471 = vrot.lane.b32.xlu0 %v269, 84
      %v472 = vpop.permute.xlu0 %471
      %vm473 = vcmask 687104
      %v474 = vsel %vm473, %v466, %v468
      %v475 = vsel %vm473, %v468, %v470
      %v476 = vsel %vm473, %v470, %v472
      %480 = vrot.lane.b32.xlu0 %v254, 83
      %v481 = vpop.permute.xlu0 %480
      %482 = vrot.lane.b32.xlu0 %v258, 83
      %v483 = vpop.permute.xlu0 %482
      %484 = vrot.lane.b32.xlu0 %v262, 83
      %v485 = vpop.permute.xlu0 %484
      %486 = vrot.lane.b32.xlu0 %v269, 83
      %v487 = vpop.permute.xlu0 %486
      %vm488 = vcmask 678912
      %v489 = vsel %vm488, %v481, %v483
      %v490 = vsel %vm488, %v483, %v485
      %v491 = vsel %vm488, %v485, %v487
      %vm495 = vcmask 1040384
      %v496 = vsel %vm495, %v254, %v279
      %v497 = vsel %vm495, %v258, %v280
      %v498 = vsel %vm495, %v262, %v281
      %vm499 = vcmask 1041408
      %v500 = vsel %vm499, %v496, %v294
      %v501 = vsel %vm499, %v497, %v295
      %v502 = vsel %vm499, %v498, %v296
      %vm503 = vcmask 1042432
      %v504 = vsel %vm503, %v500, %v309
      %v505 = vsel %vm503, %v501, %v310
      %v506 = vsel %vm503, %v502, %v311
      %vm507 = vcmask 1043456
      %v508 = vsel %vm507, %v504, %v324
      %v509 = vsel %vm507, %v505, %v325
      %v510 = vsel %vm507, %v506, %v326
      %vm511 = vcmask 1044480
      %v512 = vsel %vm511, %v508, %v339
      %v513 = vsel %vm511, %v509, %v340
      %v514 = vsel %vm511, %v510, %v341
      %vm515 = vcmask 1045504
      %v516 = vsel %vm515, %v512, %v354
      %v517 = vsel %vm515, %v513, %v355
      %v518 = vsel %vm515, %v514, %v356
      %vm519 = vcmask 1046528
      %v520 = vsel %vm519, %v516, %v369
      %v521 = vsel %vm519, %v517, %v370
      %v522 = vsel %vm519, %v518, %v371
      %v523 = vsel %vm495, %v384, %v399
      %v524 = vsel %vm495, %v385, %v400
      %v525 = vsel %vm495, %v386, %v401
      %v526 = vsel %vm499, %v523, %v414
      %v527 = vsel %vm499, %v524, %v415
      %v528 = vsel %vm499, %v525, %v416
      %v529 = vsel %vm503, %v526, %v429
      %v530 = vsel %vm503, %v527, %v430
      %v531 = vsel %vm503, %v528, %v431
      %v532 = vsel %vm507, %v529, %v444
      %v533 = vsel %vm507, %v530, %v445
      %v534 = vsel %vm507, %v531, %v446
      %v535 = vsel %vm511, %v532, %v459
      %v536 = vsel %vm511, %v533, %v460
      %v537 = vsel %vm511, %v534, %v461
      %v538 = vsel %vm515, %v535, %v474
      %v539 = vsel %vm515, %v536, %v475
      %v540 = vsel %vm515, %v537, %v476
      %v541 = vsel %vm519, %v538, %v489
      %v542 = vsel %vm519, %v539, %v490
      %v543 = vsel %vm519, %v540, %v491
      %549 = vrot.lane.b32.xlu0 %v254, 108
      %v550 = vpop.permute.xlu0 %549
      %551 = vrot.lane.b32.xlu0 %v258, 108
      %v552 = vpop.permute.xlu0 %551
      %553 = vrot.lane.b32.xlu0 %v262, 108
      %v554 = vpop.permute.xlu0 %553
      %555 = vrot.lane.b32.xlu0 %v269, 108
      %v556 = vpop.permute.xlu0 %555
      %vm557 = vcmask 883712
      %v558 = vsel %vm557, %v550, %v552
      %v559 = vsel %vm557, %v552, %v554
      %v560 = vsel %vm557, %v554, %v556
      %565 = vrot.lane.b32.xlu0 %v254, 107
      %v566 = vpop.permute.xlu0 %565
      %567 = vrot.lane.b32.xlu0 %v258, 107
      %v568 = vpop.permute.xlu0 %567
      %569 = vrot.lane.b32.xlu0 %v262, 107
      %v570 = vpop.permute.xlu0 %569
      %571 = vrot.lane.b32.xlu0 %v269, 107
      %v572 = vpop.permute.xlu0 %571
      %vm573 = vcmask 875520
      %v574 = vsel %vm573, %v566, %v568
      %v575 = vsel %vm573, %v568, %v570
      %v576 = vsel %vm573, %v570, %v572
      %586 = vrot.lane.b32.xlu0 %v254, 86
      %v587 = vpop.permute.xlu0 %586
      %588 = vrot.lane.b32.xlu0 %v258, 86
      %v589 = vpop.permute.xlu0 %588
      %590 = vrot.lane.b32.xlu0 %v262, 86
      %v591 = vpop.permute.xlu0 %590
      %592 = vrot.lane.b32.xlu0 %v269, 86
      %v593 = vpop.permute.xlu0 %592
      %vm594 = vcmask 703488
      %v595 = vsel %vm594, %v587, %v589
      %v596 = vsel %vm594, %v589, %v591
      %v597 = vsel %vm594, %v591, %v593
      %602 = vrot.lane.b32.xlu0 %v254, 85
      %v603 = vpop.permute.xlu0 %602
      %604 = vrot.lane.b32.xlu0 %v258, 85
      %v605 = vpop.permute.xlu0 %604
      %606 = vrot.lane.b32.xlu0 %v262, 85
      %v607 = vpop.permute.xlu0 %606
      %608 = vrot.lane.b32.xlu0 %v269, 85
      %v609 = vpop.permute.xlu0 %608
      %vm610 = vcmask 695296
      %v611 = vsel %vm610, %v603, %v605
      %v612 = vsel %vm610, %v605, %v607
      %v613 = vsel %vm610, %v607, %v609
      %v620 = vsel %vm495, %v269, %v277
      %v621 = vsel %vm499, %v620, %v292
      %v622 = vsel %vm503, %v621, %v307
      %v623 = vsel %vm507, %v622, %v322
      %v624 = vsel %vm511, %v508, %v558
      %v625 = vsel %vm511, %v509, %v559
      %v626 = vsel %vm511, %v510, %v560
      %v627 = vsel %vm511, %v623, %v556
      %v628 = vsel %vm515, %v624, %v574
      %v629 = vsel %vm515, %v625, %v575
      %v630 = vsel %vm515, %v626, %v576
      %v631 = vsel %vm515, %v627, %v572
      %v632 = vsel %vm519, %v628, %v369
      %v633 = vsel %vm519, %v629, %v370
      %v634 = vsel %vm519, %v630, %v371
      %v635 = vsel %vm519, %v631, %v367
      %v636 = vsel %vm495, %v382, %v397
      %v637 = vsel %vm499, %v636, %v412
      %v638 = vsel %vm503, %v637, %v427
      %v639 = vsel %vm507, %v529, %v595
      %v640 = vsel %vm507, %v530, %v596
      %v641 = vsel %vm507, %v531, %v597
      %v642 = vsel %vm507, %v638, %v593
      %v643 = vsel %vm511, %v639, %v611
      %v644 = vsel %vm511, %v640, %v612
      %v645 = vsel %vm511, %v641, %v613
      %v646 = vsel %vm511, %v642, %v609
      %v647 = vsel %vm515, %v643, %v474
      %v648 = vsel %vm515, %v644, %v475
      %v649 = vsel %vm515, %v645, %v476
      %v650 = vsel %vm515, %v646, %v472
      %v651 = vsel %vm519, %v647, %v489
      %v652 = vsel %vm519, %v648, %v490
      %v653 = vsel %vm519, %v649, %v491
      %v654 = vsel %vm519, %v650, %v487
      %655 = vrot.lane.b32.xlu0 %v254, 110
      %v656 = vpop.permute.xlu0 %655
      %657 = vrot.lane.b32.xlu0 %v258, 110
      %v658 = vpop.permute.xlu0 %657
      %659 = vrot.lane.b32.xlu0 %v262, 110
      %v660 = vpop.permute.xlu0 %659
      %661 = vrot.lane.b32.xlu0 %v269, 110
      %v662 = vpop.permute.xlu0 %661
      %vm663 = vcmask 900096
      %v664 = vsel %vm663, %v656, %v658
      %v665 = vsel %vm663, %v658, %v660
      %v666 = vsel %vm663, %v660, %v662
      %671 = vrot.lane.b32.xlu0 %v254, 109
      %v672 = vpop.permute.xlu0 %671
      %673 = vrot.lane.b32.xlu0 %v258, 109
      %v674 = vpop.permute.xlu0 %673
      %675 = vrot.lane.b32.xlu0 %v262, 109
      %v676 = vpop.permute.xlu0 %675
      %677 = vrot.lane.b32.xlu0 %v269, 109
      %v678 = vpop.permute.xlu0 %677
      %vm679 = vcmask 891904
      %v680 = vsel %vm679, %v672, %v674
      %v681 = vsel %vm679, %v674, %v676
      %v682 = vsel %vm679, %v676, %v678
      %v687 = vlaneseq
      %v688 = vshrl.u32 %v687, 7
      %v689 = vsub.s32 4, %v688
      %v690 = vrot.slane %v249, %v689
      %691 = vrot.lane.b32.xlu0 %v258, 88
      %v692 = vpop.permute.xlu0 %691
      %693 = vrot.lane.b32.xlu0 %v262, 88
      %v694 = vpop.permute.xlu0 %693
      %695 = vrot.lane.b32.xlu0 %v269, 88
      %v696 = vpop.permute.xlu0 %695
      %697 = vrot.lane.b32.xlu0 %v690, 88
      %v698 = vpop.permute.xlu0 %697
      %vm699 = vcmask 719872
      %v700 = vsel %vm699, %v692, %v694
      %v701 = vsel %vm699, %v694, %v696
      %v702 = vsel %vm699, %v696, %v698
      %707 = vrot.lane.b32.xlu0 %v258, 87
      %v708 = vpop.permute.xlu0 %707
      %709 = vrot.lane.b32.xlu0 %v262, 87
      %v710 = vpop.permute.xlu0 %709
      %711 = vrot.lane.b32.xlu0 %v269, 87
      %v712 = vpop.permute.xlu0 %711
      %713 = vrot.lane.b32.xlu0 %v690, 87
      %v714 = vpop.permute.xlu0 %713
      %vm715 = vcmask 711680
      %v716 = vsel %vm715, %v708, %v710
      %v717 = vsel %vm715, %v710, %v712
      %v718 = vsel %vm715, %v712, %v714
      %723 = vrot.lane.b32.xlu0 %v690, 86
      %v724 = vpop.permute.xlu0 %723
      %v725 = vsel %vm594, %v593, %v724
      %728 = vrot.lane.b32.xlu0 %v690, 85
      %v729 = vpop.permute.xlu0 %728
      %v730 = vsel %vm610, %v609, %v729
      %733 = vrot.lane.b32.xlu0 %v690, 84
      %v734 = vpop.permute.xlu0 %733
      %v735 = vsel %vm473, %v472, %v734
      %738 = vrot.lane.b32.xlu0 %v690, 83
      %v739 = vpop.permute.xlu0 %738
      %v740 = vsel %vm488, %v487, %v739
      %v743 = vsel %vm503, %v500, %v664
      %v744 = vsel %vm503, %v501, %v665
      %v745 = vsel %vm503, %v502, %v666
      %v746 = vsel %vm503, %v621, %v662
      %v747 = vsel %vm507, %v743, %v680
      %v748 = vsel %vm507, %v744, %v681
      %v749 = vsel %vm507, %v745, %v682
      %v750 = vsel %vm507, %v746, %v678
      %v751 = vsel %vm511, %v747, %v558
      %v752 = vsel %vm511, %v748, %v559
      %v753 = vsel %vm511, %v749, %v560
      %v754 = vsel %vm511, %v750, %v556
      %v755 = vsel %vm515, %v751, %v574
      %v756 = vsel %vm515, %v752, %v575
      %v757 = vsel %vm515, %v753, %v576
      %v758 = vsel %vm515, %v754, %v572
      %v759 = vsel %vm519, %v755, %v369
      %v760 = vsel %vm519, %v756, %v370
      %v761 = vsel %vm519, %v757, %v371
      %v762 = vsel %vm519, %v758, %v367
      %v763 = vsel %vm499, %v523, %v692
      %v764 = vsel %vm499, %v524, %v700
      %v765 = vsel %vm499, %v525, %v701
      %v766 = vsel %vm499, %v636, %v702
      %v767 = vsel %vm503, %v763, %v708
      %v768 = vsel %vm503, %v764, %v716
      %v769 = vsel %vm503, %v765, %v717
      %v770 = vsel %vm503, %v766, %v718
      %v771 = vsel %vm507, %v767, %v589
      %v772 = vsel %vm507, %v768, %v596
      %v773 = vsel %vm507, %v769, %v597
      %v774 = vsel %vm507, %v770, %v725
      %v775 = vsel %vm511, %v771, %v605
      %v776 = vsel %vm511, %v772, %v612
      %v777 = vsel %vm511, %v773, %v613
      %v778 = vsel %vm511, %v774, %v730
      %v779 = vsel %vm515, %v775, %v468
      %v780 = vsel %vm515, %v776, %v475
      %v781 = vsel %vm515, %v777, %v476
      %v782 = vsel %vm515, %v778, %v735
      %v783 = vsel %vm519, %v779, %v483
      %v784 = vsel %vm519, %v780, %v490
      %v785 = vsel %vm519, %v781, %v491
      %v786 = vsel %vm519, %v782, %v740
      %795 = vrot.lane.b32.xlu0 %v632, 82
      %v796 = vpop.permute.xlu0 %795
      %797 = vrot.lane.b32.xlu0 %v633, 82
      %v798 = vpop.permute.xlu0 %797
      %799 = vrot.lane.b32.xlu0 %v634, 82
      %v800 = vpop.permute.xlu0 %799
      %801 = vrot.lane.b32.xlu0 %v635, 82
      %v802 = vpop.permute.xlu0 %801
      %803 = vrot.lane.b32.xlu0 %v651, 82
      %v804 = vpop.permute.xlu0 %803
      %805 = vrot.lane.b32.xlu0 %v652, 82
      %v806 = vpop.permute.xlu0 %805
      %807 = vrot.lane.b32.xlu0 %v653, 82
      %v808 = vpop.permute.xlu0 %807
      %809 = vrot.lane.b32.xlu0 %v654, 82
      %v810 = vpop.permute.xlu0 %809
      %vm811 = vcmask 670720
      %v812 = vsel %vm811, %v796, %v798
      %v813 = vsel %vm811, %v798, %v800
      %v814 = vsel %vm811, %v800, %v802
      %v815 = vsel %vm811, %v804, %v806
      %v816 = vsel %vm811, %v806, %v808
      %v817 = vsel %vm811, %v808, %v810
      %832 = vrot.lane.b32.xlu0 %v759, 36
      %v833 = vpop.permute.xlu0 %832
      %834 = vrot.lane.b32.xlu0 %v760, 36
      %v835 = vpop.permute.xlu0 %834
      %836 = vrot.lane.b32.xlu0 %v761, 36
      %v837 = vpop.permute.xlu0 %836
      %838 = vrot.lane.b32.xlu0 %v762, 36
      %v839 = vpop.permute.xlu0 %838
      %840 = vrot.lane.b32.xlu0 %v783, 36
      %v841 = vpop.permute.xlu0 %840
      %842 = vrot.lane.b32.xlu0 %v784, 36
      %v843 = vpop.permute.xlu0 %842
      %844 = vrot.lane.b32.xlu0 %v785, 36
      %v845 = vpop.permute.xlu0 %844
      %846 = vrot.lane.b32.xlu0 %v786, 36
      %v847 = vpop.permute.xlu0 %846
      %vm848 = vcmask 293888
      %v849 = vsel %vm848, %v833, %v835
      %v850 = vsel %vm848, %v835, %v837
      %v851 = vsel %vm848, %v837, %v839
      %v852 = vsel %vm848, %v841, %v843
      %v853 = vsel %vm848, %v843, %v845
      %v854 = vsel %vm848, %v845, %v847
      %861 = vrot.lane.b32.xlu0 %v258, 118
      %v862 = vpop.permute.xlu0 %861
      %863 = vrot.lane.b32.xlu0 %v262, 118
      %v864 = vpop.permute.xlu0 %863
      %865 = vrot.lane.b32.xlu0 %v269, 118
      %v866 = vpop.permute.xlu0 %865
      %867 = vrot.lane.b32.xlu0 %v690, 118
      %v868 = vpop.permute.xlu0 %867
      %vm869 = vcmask 965632
      %v870 = vsel %vm869, %v862, %v864
      %v871 = vsel %vm869, %v864, %v866
      %v872 = vsel %vm869, %v866, %v868
      %v873 = vld [vmem:[%s1] sm:$0xff]
      %v874 = vld [vmem:[%s1 + $0x8] sm:$0xff]
      %v875 = vld [vmem:[%s1 + $0x10] sm:$0xff]
      %v876 = vld [vmem:[%s1 + $0x18] sm:$0xff]
      %v877 = vld [vmem:[%s1 + $0x20] sm:$0xff]
      %v878 = vld [vmem:[%s1 + $0x28] sm:$0xff]
      %v879 = vld [vmem:[%s1 + $0x30] sm:$0x1]
      %v880 = vld [vmem:[%s2] sm:$0xff]
      %v881 = vld [vmem:[%s2 + $0x8] sm:$0xff]
      %v882 = vld [vmem:[%s2 + $0x10] sm:$0xff]
      %v883 = vld [vmem:[%s2 + $0x18] sm:$0xff]
      %v884 = vld [vmem:[%s2 + $0x20] sm:$0xff]
      %v885 = vld [vmem:[%s2 + $0x28] sm:$0xff]
      %v886 = vld [vmem:[%s2 + $0x30] sm:$0x1]
      %888 = vset.pattern.permute.xlu0 0
      %889 = vperm.xlu0 %888, %v880
      %v890 = vpop.permute.xlu0 %889
      %893 = vset.pattern.permute.xlu0 0
      %894 = vperm.xlu0 %893, %v881
      %v895 = vpop.permute.xlu0 %894
      %898 = vset.pattern.permute.xlu0 0
      %899 = vperm.xlu0 %898, %v882
      %v900 = vpop.permute.xlu0 %899
      %903 = vset.pattern.permute.xlu0 0
      %904 = vperm.xlu0 %903, %v883
      %v905 = vpop.permute.xlu0 %904
      %908 = vset.pattern.permute.xlu0 0
      %909 = vperm.xlu0 %908, %v884
      %v910 = vpop.permute.xlu0 %909
      %913 = vset.pattern.permute.xlu0 0
      %914 = vperm.xlu0 %913, %v885
      %v915 = vpop.permute.xlu0 %914
      %918 = vset.pattern.permute.xlu0 0
      %919 = vperm.xlu0 %918, %v886
      %v920 = vpop.permute.xlu0 %919
      %vm922 = vcmask 400384
      %v924 = vsel %vm922, %v873, 0
      %v927 = vsel %vm922, %v874, 0
      %v930 = vsel %vm922, %v875, 0
      %v933 = vsel %vm922, %v876, 0
      %v936 = vsel %vm922, %v877, 0
      %v939 = vsel %vm922, %v878, 0
      %v942 = vsel %vm922, %v879, 0
      %v944 = vsel %vm495, %v870, 0
      %v946 = vsel %vm495, %v871, 0
      %v948 = vsel %vm495, %v872, 0
      %950 = vmatprep.subr.mxu0 %v521
      %951 = vmatpush1.msra.mxu0 %v520
      %952 = vmatprep.subr.mxu0 %v542
      %953 = vmatpush1.msra.mxu0 %v541
      %954 = vmatprep.subr.mxu0 %v813
      %955 = vmatpush1.msra.mxu0 %v812
      %956 = vmatprep.subr.mxu0 %v816
      %957 = vmatpush1.msra.mxu0 %v815
      %958 = vmatprep.subr.mxu0 %v850
      %959 = vmatpush1.msra.mxu0 %v849
      %960 = vmatprep.subr.mxu0 %v853
      %961 = vmatpush1.msra.mxu0 %v852
      %962 = vmatprep.subr.mxu0 %v946
      %963 = vmatpush1.msra.mxu0 %v944
      %964 = vmatprep.subr.mxu0 0.0
      %965 = vmatpush1.msra.mxu0 0.0
      %966 = vmatprep.subr.mxu0 0.0
      %967 = vmatpush1.msra.mxu0 0.0
      %968 = vmatprep.subr.mxu0 0.0
      %969 = vmatpush1.msra.mxu0 0.0
      %970 = vmatprep.subr.mxu0 0.0
      %971 = vmatpush1.msra.mxu0 0.0
      %972 = vmatprep.subr.mxu0 0.0
      %973 = vmatpush1.msra.mxu0 0.0
      %974 = vmatprep.subr.mxu0 0.0
      %975 = vmatpush1.msra.mxu0 0.0
      %976 = vmatprep.subr.mxu0 0.0
      %977 = vmatpush1.msra.mxu0 0.0
      %978 = vmatprep.subr.mxu0 0.0
      %979 = vmatpush1.msra.mxu0 0.0
      %980 = vmatprep.subr.mxu0 0.0
      %981 = vmatpush1.msra.mxu0 0.0
      %982 = vmatprep.subr.mxu0 0.0
      %983 = vmatpush1.msra.mxu0 0.0
      %984 = vmatprep.subr.mxu0 0.0
      %985 = vmatpush1.msra.mxu0 0.0
      %986 = vmatprep.subr.mxu0 0.0
      %987 = vmatpush1.msra.mxu0 0.0
      %988 = vmatprep.subr.mxu0 0.0
      %989 = vmatpush1.msra.mxu0 0.0
      %990 = vmatprep.subr.mxu0 0.0
      %991 = vmatpush1.msra.mxu0 0.0
      %992 = vmatprep.subr.mxu0 0.0
      %993 = vmatpush1.msra.mxu0 0.0
      %994 = vmatprep.subr.mxu0 0.0
      %995 = vmatpush1.msra.mxu0 0.0
      %996 = vmatprep.subr.mxu0 0.0
      %997 = vmatpush1.msra.mxu0 0.0
      %998 = vmatprep.subr.mxu0 0.0
      %999 = vmatpush1.msra.mxu0 0.0
      %1000 = vmatprep.subr.mxu0 0.0
      %1001 = vmatpush1.msra.mxu0 0.0
      %1002 = vmatprep.subr.mxu0 0.0
      %1003 = vmatpush1.msra.mxu0 0.0
      %1004 = vmatprep.subr.mxu0 0.0
      %1005 = vmatpush1.msra.mxu0 0.0
      %1006 = vmatprep.subr.mxu0 0.0
      %1007 = vmatpush1.msra.mxu0 0.0
      %1008 = vmatprep.subr.mxu0 0.0
      %1009 = vmatpush1.msra.mxu0 0.0
      %1010 = vmatprep.subr.mxu0 0.0
      %1011 = vmatpush1.msra.mxu0 0.0
      %1012 = vmatprep.subr.mxu0 0.0
      %1013 = vmatpush1.msra.mxu0 0.0
      %1014 = vmatprep.mubr.f32.mxu0 0.0
      %1015 = vmatmul.mubr.f32.gmra.mrb[0].mxu0 %v924
      %v1016 = vpop.f32.mrb[0].mxu0
      %v1017 = vadd.f32 %v890, %v1016
      %v1018 = vpop.f32.mrb[0].mxu0
      %v1019 = vadd.f32 %v890, %v1018
      %1020 = vmatprep.mubr.f32.mxu0 0.0
      %1021 = vmatmul.mubr.f32.gmra.mrb[0].mxu0 %v927
      %v1022 = vpop.f32.mrb[0].mxu0
      %v1023 = vadd.f32 %v895, %v1022
      %v1024 = vpop.f32.mrb[0].mxu0
      %v1025 = vadd.f32 %v895, %v1024
      %1026 = vmatprep.mubr.f32.mxu0 0.0
      %1027 = vmatmul.mubr.f32.gmra.mrb[0].mxu0 %v930
      %v1028 = vpop.f32.mrb[0].mxu0
      %v1029 = vadd.f32 %v900, %v1028
      %v1030 = vpop.f32.mrb[0].mxu0
      %v1031 = vadd.f32 %v900, %v1030
      %1032 = vmatprep.mubr.f32.mxu0 0.0
      %1033 = vmatmul.mubr.f32.gmra.mrb[0].mxu0 %v933
      %v1034 = vpop.f32.mrb[0].mxu0
      %v1035 = vadd.f32 %v905, %v1034
      %v1036 = vpop.f32.mrb[0].mxu0
      %v1037 = vadd.f32 %v905, %v1036
      %1038 = vmatprep.mubr.f32.mxu0 0.0
      %1039 = vmatmul.mubr.f32.gmra.mrb[0].mxu0 %v936
      %v1040 = vpop.f32.mrb[0].mxu0
      %v1041 = vadd.f32 %v910, %v1040
      %v1042 = vpop.f32.mrb[0].mxu0
      %v1043 = vadd.f32 %v910, %v1042
      %1044 = vmatprep.mubr.f32.mxu0 0.0
      %1045 = vmatmul.mubr.f32.gmra.mrb[0].mxu0 %v939
      %v1046 = vpop.f32.mrb[0].mxu0
      %v1047 = vadd.f32 %v915, %v1046
      %v1048 = vpop.f32.mrb[0].mxu0
      %v1049 = vadd.f32 %v915, %v1048
      %1050 = vmatprep.mubr.f32.mxu0 0.0
      %1051 = vmatmul.mubr.f32.gmra.mrb[0].mxu0 %v942
      %v1052 = vpop.f32.mrb[0].mxu0
      %v1053 = vadd.f32 %v920, %v1052
      %v1054 = vpop.f32.mrb[0].mxu0
      %v1055 = vadd.f32 %v920, %v1054
      %1056 = vdwg.mxu0
      %1057 = vmatprep.subr.mxu0 0.0
      %1058 = vmatpush1.msra.mxu0 %v522
      %1059 = vmatprep.subr.mxu0 0.0
      %1060 = vmatpush1.msra.mxu0 %v543
      %1061 = vmatprep.subr.mxu0 0.0
      %1062 = vmatpush1.msra.mxu0 %v814
      %1063 = vmatprep.subr.mxu0 0.0
      %1064 = vmatpush1.msra.mxu0 %v817
      %1065 = vmatprep.subr.mxu0 0.0
      %1066 = vmatpush1.msra.mxu0 %v851
      %1067 = vmatprep.subr.mxu0 0.0
      %1068 = vmatpush1.msra.mxu0 %v854
      %1069 = vmatprep.subr.mxu0 0.0
      %1070 = vmatpush1.msra.mxu0 %v948
      %1071 = vmatprep.subr.mxu0 0.0
      %1072 = vmatpush1.msra.mxu0 0.0
      %1073 = vmatprep.subr.mxu0 0.0
      %1074 = vmatpush1.msra.mxu0 0.0
      %1075 = vmatprep.subr.mxu0 0.0
      %1076 = vmatpush1.msra.mxu0 0.0
      %1077 = vmatprep.subr.mxu0 0.0
      %1078 = vmatpush1.msra.mxu0 0.0
      %1079 = vmatprep.subr.mxu0 0.0
      %1080 = vmatpush1.msra.mxu0 0.0
      %1081 = vmatprep.subr.mxu0 0.0
      %1082 = vmatpush1.msra.mxu0 0.0
      %1083 = vmatprep.subr.mxu0 0.0
      %1084 = vmatpush1.msra.mxu0 0.0
      %1085 = vmatprep.subr.mxu0 0.0
      %1086 = vmatpush1.msra.mxu0 0.0
      %1087 = vmatprep.subr.mxu0 0.0
      %1088 = vmatpush1.msra.mxu0 0.0
      %1089 = vmatprep.subr.mxu0 0.0
      %1090 = vmatpush1.msra.mxu0 0.0
      %1091 = vmatprep.subr.mxu0 0.0
      %1092 = vmatpush1.msra.mxu0 0.0
      %1093 = vmatprep.subr.mxu0 0.0
      %1094 = vmatpush1.msra.mxu0 0.0
      %1095 = vmatprep.subr.mxu0 0.0
      %1096 = vmatpush1.msra.mxu0 0.0
      %1097 = vmatprep.subr.mxu0 0.0
      %1098 = vmatpush1.msra.mxu0 0.0
      %1099 = vmatprep.subr.mxu0 0.0
      %1100 = vmatpush1.msra.mxu0 0.0
      %1101 = vmatprep.subr.mxu0 0.0
      %1102 = vmatpush1.msra.mxu0 0.0
      %1103 = vmatprep.subr.mxu0 0.0
      %1104 = vmatpush1.msra.mxu0 0.0
      %1105 = vmatprep.subr.mxu0 0.0
      %1106 = vmatpush1.msra.mxu0 0.0
      %1107 = vmatprep.subr.mxu0 0.0
      %1108 = vmatpush1.msra.mxu0 0.0
      %1109 = vmatprep.subr.mxu0 0.0
      %1110 = vmatpush1.msra.mxu0 0.0
      %1111 = vmatprep.subr.mxu0 0.0
      %1112 = vmatpush1.msra.mxu0 0.0
      %1113 = vmatprep.subr.mxu0 0.0
      %1114 = vmatpush1.msra.mxu0 0.0
      %1115 = vmatprep.subr.mxu0 0.0
      %1116 = vmatpush1.msra.mxu0 0.0
      %1117 = vmatprep.subr.mxu0 0.0
      %1118 = vmatpush1.msra.mxu0 0.0
      %1119 = vmatprep.subr.mxu0 0.0
      %1120 = vmatpush1.msra.mxu0 0.0
      %1121 = vmatprep.mubr.f32.mxu0 0.0
      %1122 = vmatmul.mubr.f32.gmra.mrb[0].mxu0 %v924
      %v1123 = vpop.f32.mrb[0].mxu0
      %v1124 = vadd.f32 %v890, %v1123
      %v1125 = vpop.f32.mrb[0].mxu0
      %1126 = vmatprep.mubr.f32.mxu0 0.0
      %1127 = vmatmul.mubr.f32.gmra.mrb[0].mxu0 %v927
      %v1128 = vpop.f32.mrb[0].mxu0
      %v1129 = vadd.f32 %v895, %v1128
      %v1130 = vpop.f32.mrb[0].mxu0
      %1131 = vmatprep.mubr.f32.mxu0 0.0
      %1132 = vmatmul.mubr.f32.gmra.mrb[0].mxu0 %v930
      %v1133 = vpop.f32.mrb[0].mxu0
      %v1134 = vadd.f32 %v900, %v1133
      %v1135 = vpop.f32.mrb[0].mxu0
      %1136 = vmatprep.mubr.f32.mxu0 0.0
      %1137 = vmatmul.mubr.f32.gmra.mrb[0].mxu0 %v933
      %v1138 = vpop.f32.mrb[0].mxu0
      %v1139 = vadd.f32 %v905, %v1138
      %v1140 = vpop.f32.mrb[0].mxu0
      %1141 = vmatprep.mubr.f32.mxu0 0.0
      %1142 = vmatmul.mubr.f32.gmra.mrb[0].mxu0 %v936
      %v1143 = vpop.f32.mrb[0].mxu0
      %v1144 = vadd.f32 %v910, %v1143
      %v1145 = vpop.f32.mrb[0].mxu0
      %1146 = vmatprep.mubr.f32.mxu0 0.0
      %1147 = vmatmul.mubr.f32.gmra.mrb[0].mxu0 %v939
      %v1148 = vpop.f32.mrb[0].mxu0
      %v1149 = vadd.f32 %v915, %v1148
      %v1150 = vpop.f32.mrb[0].mxu0
      %1151 = vmatprep.mubr.f32.mxu0 0.0
      %1152 = vmatmul.mubr.f32.gmra.mrb[0].mxu0 %v942
      %v1153 = vpop.f32.mrb[0].mxu0
      %v1154 = vadd.f32 %v920, %v1153
      %v1155 = vpop.f32.mrb[0].mxu0
      %1156 = vdwg.mxu0
      %v1157 = vmax.f32 %v1017, -0.5
      %v1158 = vmax.f32 %v1019, -0.5
      %v1159 = vmax.f32 %v1124, -0.5
      %v1160 = vmax.f32 %v1023, -0.5
      %v1161 = vmax.f32 %v1025, -0.5
      %v1162 = vmax.f32 %v1129, -0.5
      %v1163 = vmax.f32 %v1029, -0.5
      %v1164 = vmax.f32 %v1031, -0.5
      %v1165 = vmax.f32 %v1134, -0.5
      %v1166 = vmax.f32 %v1035, -0.5
      %v1167 = vmax.f32 %v1037, -0.5
      %v1168 = vmax.f32 %v1139, -0.5
      %v1169 = vmax.f32 %v1041, -0.5
      %v1170 = vmax.f32 %v1043, -0.5
      %v1171 = vmax.f32 %v1144, -0.5
      %v1172 = vmax.f32 %v1047, -0.5
      %v1173 = vmax.f32 %v1049, -0.5
      %v1174 = vmax.f32 %v1149, -0.5
      %v1175 = vmax.f32 %v1053, -0.5
      %v1176 = vmax.f32 %v1055, -0.5
      %v1177 = vmax.f32 %v1154, -0.5
      %v1178 = vmin.f32 %v1157, 0.5
      %v1179 = vmin.f32 %v1158, 0.5
      %v1180 = vmin.f32 %v1159, 0.5
      %v1181 = vmin.f32 %v1160, 0.5
      %v1182 = vmin.f32 %v1161, 0.5
      %v1183 = vmin.f32 %v1162, 0.5
      %v1184 = vmin.f32 %v1163, 0.5
      %v1185 = vmin.f32 %v1164, 0.5
      %v1186 = vmin.f32 %v1165, 0.5
      %v1187 = vmin.f32 %v1166, 0.5
      %v1188 = vmin.f32 %v1167, 0.5
      %v1189 = vmin.f32 %v1168, 0.5
      %v1190 = vmin.f32 %v1169, 0.5
      %v1191 = vmin.f32 %v1170, 0.5
      %v1192 = vmin.f32 %v1171, 0.5
      %v1193 = vmin.f32 %v1172, 0.5
      %v1194 = vmin.f32 %v1173, 0.5
      %v1195 = vmin.f32 %v1174, 0.5
      %v1196 = vmin.f32 %v1175, 0.5
      %v1197 = vmin.f32 %v1176, 0.5
      %v1198 = vmin.f32 %v1177, 0.5
      %v1199 = vsub.f32 %v1017, %v1178
      %v1200 = vsub.f32 %v1019, %v1179
      %v1201 = vsub.f32 %v1124, %v1180
      %v1202 = vsub.f32 %v1023, %v1181
      %v1203 = vsub.f32 %v1025, %v1182
      %v1204 = vsub.f32 %v1129, %v1183
      %v1205 = vsub.f32 %v1029, %v1184
      %v1206 = vsub.f32 %v1031, %v1185
      %v1207 = vsub.f32 %v1134, %v1186
      %v1208 = vsub.f32 %v1035, %v1187
      %v1209 = vsub.f32 %v1037, %v1188
      %v1210 = vsub.f32 %v1139, %v1189
      %v1211 = vsub.f32 %v1041, %v1190
      %v1212 = vsub.f32 %v1043, %v1191
      %v1213 = vsub.f32 %v1144, %v1192
      %v1214 = vsub.f32 %v1047, %v1193
      %v1215 = vsub.f32 %v1049, %v1194
      %v1216 = vsub.f32 %v1149, %v1195
      %v1217 = vsub.f32 %v1053, %v1196
      %v1218 = vsub.f32 %v1055, %v1197
      %v1219 = vsub.f32 %v1154, %v1198
      %v1220 = vld [vmem:[%s3] sm:$0xff]
      %v1221 = vld [vmem:[%s3 + $0x8] sm:$0xff]
      %v1222 = vld [vmem:[%s3 + $0x10] sm:$0xff]
      %v1223 = vld [vmem:[%s3 + $0x18] sm:$0xff]
      %v1224 = vld [vmem:[%s3 + $0x20] sm:$0xff]
      %v1225 = vld [vmem:[%s3 + $0x28] sm:$0xff]
      %v1226 = vld [vmem:[%s3 + $0x30] sm:$0x1]
      %v1228 = vsel %vm922, %v1220, 0
      %v1231 = vsel %vm922, %v1221, 0
      %v1234 = vsel %vm922, %v1222, 0
      %v1237 = vsel %vm922, %v1223, 0
      %v1240 = vsel %vm922, %v1224, 0
      %v1243 = vsel %vm922, %v1225, 0
      %v1246 = vsel %vm922, %v1226, 0
      %v1249 = vsel %vm495, %v1217, 0
      %v1252 = vsel %vm495, %v1218, 0
      %v1255 = vsel %vm495, %v1219, 0
      %1257 = vmatprep.subr.mxu0 %v1200
      %1258 = vmatpush1.msra.mxu0 %v1199
      %1259 = vmatprep.subr.mxu0 %v1203
      %1260 = vmatpush1.msra.mxu0 %v1202
      %1261 = vmatprep.subr.mxu0 %v1206
      %1262 = vmatpush1.msra.mxu0 %v1205
      %1263 = vmatprep.subr.mxu0 %v1209
      %1264 = vmatpush1.msra.mxu0 %v1208
      %1265 = vmatprep.subr.mxu0 %v1212
      %1266 = vmatpush1.msra.mxu0 %v1211
      %1267 = vmatprep.subr.mxu0 %v1215
      %1268 = vmatpush1.msra.mxu0 %v1214
      %1269 = vmatprep.subr.mxu0 %v1252
      %1270 = vmatpush1.msra.mxu0 %v1249
      %1271 = vmatprep.subr.mxu0 0.0
      %1272 = vmatpush1.msra.mxu0 0.0
      %1273 = vmatprep.subr.mxu0 0.0
      %1274 = vmatpush1.msra.mxu0 0.0
      %1275 = vmatprep.subr.mxu0 0.0
      %1276 = vmatpush1.msra.mxu0 0.0
      %1277 = vmatprep.subr.mxu0 0.0
      %1278 = vmatpush1.msra.mxu0 0.0
      %1279 = vmatprep.subr.mxu0 0.0
      %1280 = vmatpush1.msra.mxu0 0.0
      %1281 = vmatprep.subr.mxu0 0.0
      %1282 = vmatpush1.msra.mxu0 0.0
      %1283 = vmatprep.subr.mxu0 0.0
      %1284 = vmatpush1.msra.mxu0 0.0
      %1285 = vmatprep.subr.mxu0 0.0
      %1286 = vmatpush1.msra.mxu0 0.0
      %1287 = vmatprep.subr.mxu0 0.0
      %1288 = vmatpush1.msra.mxu0 0.0
      %1289 = vmatprep.subr.mxu0 0.0
      %1290 = vmatpush1.msra.mxu0 0.0
      %1291 = vmatprep.subr.mxu0 0.0
      %1292 = vmatpush1.msra.mxu0 0.0
      %1293 = vmatprep.subr.mxu0 0.0
      %1294 = vmatpush1.msra.mxu0 0.0
      %1295 = vmatprep.subr.mxu0 0.0
      %1296 = vmatpush1.msra.mxu0 0.0
      %1297 = vmatprep.subr.mxu0 0.0
      %1298 = vmatpush1.msra.mxu0 0.0
      %1299 = vmatprep.subr.mxu0 0.0
      %1300 = vmatpush1.msra.mxu0 0.0
      %1301 = vmatprep.subr.mxu0 0.0
      %1302 = vmatpush1.msra.mxu0 0.0
      %1303 = vmatprep.subr.mxu0 0.0
      %1304 = vmatpush1.msra.mxu0 0.0
      %1305 = vmatprep.subr.mxu0 0.0
      %1306 = vmatpush1.msra.mxu0 0.0
      %1307 = vmatprep.subr.mxu0 0.0
      %1308 = vmatpush1.msra.mxu0 0.0
      %1309 = vmatprep.subr.mxu0 0.0
      %1310 = vmatpush1.msra.mxu0 0.0
      %1311 = vmatprep.subr.mxu0 0.0
      %1312 = vmatpush1.msra.mxu0 0.0
      %1313 = vmatprep.subr.mxu0 0.0
      %1314 = vmatpush1.msra.mxu0 0.0
      %1315 = vmatprep.subr.mxu0 0.0
      %1316 = vmatpush1.msra.mxu0 0.0
      %1317 = vmatprep.subr.mxu0 0.0
      %1318 = vmatpush1.msra.mxu0 0.0
      %1319 = vmatprep.subr.mxu0 0.0
      %1320 = vmatpush1.msra.mxu0 0.0
      %1321 = vmatprep.mubr.f32.mxu0 0.0
      %1322 = vmatmul.mubr.f32.gmra.mrb[0].mxu0 %v1228
      %v1323 = vpop.f32.mrb[0].mxu0
      %v1324 = vadd.f32 0.0, %v1323
      %v1325 = vpop.f32.mrb[0].mxu0
      %v1326 = vadd.f32 0.0, %v1325
      %1327 = vmatprep.mubr.f32.mxu0 0.0
      %1328 = vmatmul.mubr.f32.gmra.mrb[0].mxu0 %v1231
      %v1329 = vpop.f32.mrb[0].mxu0
      %v1330 = vadd.f32 0.0, %v1329
      %v1331 = vpop.f32.mrb[0].mxu0
      %v1332 = vadd.f32 0.0, %v1331
      %1333 = vmatprep.mubr.f32.mxu0 0.0
      %1334 = vmatmul.mubr.f32.gmra.mrb[0].mxu0 %v1234
      %v1335 = vpop.f32.mrb[0].mxu0
      %v1336 = vadd.f32 0.0, %v1335
      %v1337 = vpop.f32.mrb[0].mxu0
      %v1338 = vadd.f32 0.0, %v1337
      %1339 = vmatprep.mubr.f32.mxu0 0.0
      %1340 = vmatmul.mubr.f32.gmra.mrb[0].mxu0 %v1237
      %v1341 = vpop.f32.mrb[0].mxu0
      %v1342 = vadd.f32 0.0, %v1341
      %v1343 = vpop.f32.mrb[0].mxu0
      %v1344 = vadd.f32 0.0, %v1343
      %1345 = vmatprep.mubr.f32.mxu0 0.0
      %1346 = vmatmul.mubr.f32.gmra.mrb[0].mxu0 %v1240
      %v1347 = vpop.f32.mrb[0].mxu0
      %v1348 = vadd.f32 0.0, %v1347
      %v1349 = vpop.f32.mrb[0].mxu0
      %v1350 = vadd.f32 0.0, %v1349
      %1351 = vmatprep.mubr.f32.mxu0 0.0
      %1352 = vmatmul.mubr.f32.gmra.mrb[0].mxu0 %v1243
      %v1353 = vpop.f32.mrb[0].mxu0
      %v1354 = vadd.f32 0.0, %v1353
      %v1355 = vpop.f32.mrb[0].mxu0
      %v1356 = vadd.f32 0.0, %v1355
      %1357 = vmatprep.mubr.f32.mxu0 0.0
      %1358 = vmatmul.mubr.f32.gmra.mrb[0].mxu0 %v1246
      %v1359 = vpop.f32.mrb[0].mxu0
      %v1360 = vadd.f32 0.0, %v1359
      %v1361 = vpop.f32.mrb[0].mxu0
      %v1362 = vadd.f32 0.0, %v1361
      %1363 = vdwg.mxu0
      %1364 = vmatprep.subr.mxu0 0.0
      %1365 = vmatpush1.msra.mxu0 %v1201
      %1366 = vmatprep.subr.mxu0 0.0
      %1367 = vmatpush1.msra.mxu0 %v1204
      %1368 = vmatprep.subr.mxu0 0.0
      %1369 = vmatpush1.msra.mxu0 %v1207
      %1370 = vmatprep.subr.mxu0 0.0
      %1371 = vmatpush1.msra.mxu0 %v1210
      %1372 = vmatprep.subr.mxu0 0.0
      %1373 = vmatpush1.msra.mxu0 %v1213
      %1374 = vmatprep.subr.mxu0 0.0
      %1375 = vmatpush1.msra.mxu0 %v1216
      %1376 = vmatprep.subr.mxu0 0.0
      %1377 = vmatpush1.msra.mxu0 %v1255
      %1378 = vmatprep.subr.mxu0 0.0
      %1379 = vmatpush1.msra.mxu0 0.0
      %1380 = vmatprep.subr.mxu0 0.0
      %1381 = vmatpush1.msra.mxu0 0.0
      %1382 = vmatprep.subr.mxu0 0.0
      %1383 = vmatpush1.msra.mxu0 0.0
      %1384 = vmatprep.subr.mxu0 0.0
      %1385 = vmatpush1.msra.mxu0 0.0
      %1386 = vmatprep.subr.mxu0 0.0
      %1387 = vmatpush1.msra.mxu0 0.0
      %1388 = vmatprep.subr.mxu0 0.0
      %1389 = vmatpush1.msra.mxu0 0.0
      %1390 = vmatprep.subr.mxu0 0.0
      %1391 = vmatpush1.msra.mxu0 0.0
      %1392 = vmatprep.subr.mxu0 0.0
      %1393 = vmatpush1.msra.mxu0 0.0
      %1394 = vmatprep.subr.mxu0 0.0
      %1395 = vmatpush1.msra.mxu0 0.0
      %1396 = vmatprep.subr.mxu0 0.0
      %1397 = vmatpush1.msra.mxu0 0.0
      %1398 = vmatprep.subr.mxu0 0.0
      %1399 = vmatpush1.msra.mxu0 0.0
      %1400 = vmatprep.subr.mxu0 0.0
      %1401 = vmatpush1.msra.mxu0 0.0
      %1402 = vmatprep.subr.mxu0 0.0
      %1403 = vmatpush1.msra.mxu0 0.0
      %1404 = vmatprep.subr.mxu0 0.0
      %1405 = vmatpush1.msra.mxu0 0.0
      %1406 = vmatprep.subr.mxu0 0.0
      %1407 = vmatpush1.msra.mxu0 0.0
      %1408 = vmatprep.subr.mxu0 0.0
      %1409 = vmatpush1.msra.mxu0 0.0
      %1410 = vmatprep.subr.mxu0 0.0
      %1411 = vmatpush1.msra.mxu0 0.0
      %1412 = vmatprep.subr.mxu0 0.0
      %1413 = vmatpush1.msra.mxu0 0.0
      %1414 = vmatprep.subr.mxu0 0.0
      %1415 = vmatpush1.msra.mxu0 0.0
      %1416 = vmatprep.subr.mxu0 0.0
      %1417 = vmatpush1.msra.mxu0 0.0
      %1418 = vmatprep.subr.mxu0 0.0
      %1419 = vmatpush1.msra.mxu0 0.0
      %1420 = vmatprep.subr.mxu0 0.0
      %1421 = vmatpush1.msra.mxu0 0.0
      %1422 = vmatprep.subr.mxu0 0.0
      %1423 = vmatpush1.msra.mxu0 0.0
      %1424 = vmatprep.subr.mxu0 0.0
      %1425 = vmatpush1.msra.mxu0 0.0
      %1426 = vmatprep.subr.mxu0 0.0
      %1427 = vmatpush1.msra.mxu0 0.0
      %1428 = vmatprep.mubr.f32.mxu0 0.0
      %1429 = vmatmul.mubr.f32.gmra.mrb[0].mxu0 %v1228
      %v1430 = vpop.f32.mrb[0].mxu0
      %v1431 = vadd.f32 0.0, %v1430
      %v1432 = vpop.f32.mrb[0].mxu0
      %1433 = vmatprep.mubr.f32.mxu0 0.0
      %1434 = vmatmul.mubr.f32.gmra.mrb[0].mxu0 %v1231
      %v1435 = vpop.f32.mrb[0].mxu0
      %v1436 = vadd.f32 0.0, %v1435
      %v1437 = vpop.f32.mrb[0].mxu0
      %1438 = vmatprep.mubr.f32.mxu0 0.0
      %1439 = vmatmul.mubr.f32.gmra.mrb[0].mxu0 %v1234
      %v1440 = vpop.f32.mrb[0].mxu0
      %v1441 = vadd.f32 0.0, %v1440
      %v1442 = vpop.f32.mrb[0].mxu0
      %1443 = vmatprep.mubr.f32.mxu0 0.0
      %1444 = vmatmul.mubr.f32.gmra.mrb[0].mxu0 %v1237
      %v1445 = vpop.f32.mrb[0].mxu0
      %v1446 = vadd.f32 0.0, %v1445
      %v1447 = vpop.f32.mrb[0].mxu0
      %1448 = vmatprep.mubr.f32.mxu0 0.0
      %1449 = vmatmul.mubr.f32.gmra.mrb[0].mxu0 %v1240
      %v1450 = vpop.f32.mrb[0].mxu0
      %v1451 = vadd.f32 0.0, %v1450
      %v1452 = vpop.f32.mrb[0].mxu0
      %1453 = vmatprep.mubr.f32.mxu0 0.0
      %1454 = vmatmul.mubr.f32.gmra.mrb[0].mxu0 %v1243
      %v1455 = vpop.f32.mrb[0].mxu0
      %v1456 = vadd.f32 0.0, %v1455
      %v1457 = vpop.f32.mrb[0].mxu0
      %1458 = vmatprep.mubr.f32.mxu0 0.0
      %1459 = vmatmul.mubr.f32.gmra.mrb[0].mxu0 %v1246
      %v1460 = vpop.f32.mrb[0].mxu0
      %v1461 = vadd.f32 0.0, %v1460
      %v1462 = vpop.f32.mrb[0].mxu0
      %1463 = vdwg.mxu0
      %v1464 = vld [vmem:[%s4] sm:$0x7]
      %v1466 = vlaneseq
      %v1467 = vshrl.u32 %v1466, 7
      %v1468 = vsub.s32 0, %v1467
      %v1469 = vrot.slane %v1464, %v1468
      %v1470 = vlaneseq
      %v1471 = vshrl.u32 %v1470, 7
      %v1472 = vsub.s32 1, %v1471
      %v1473 = vrot.slane %v1464, %v1472
      %v1474 = vlaneseq
      %v1475 = vshrl.u32 %v1474, 7
      %v1476 = vsub.s32 2, %v1475
      %v1477 = vrot.slane %v1464, %v1476
      %v1481 = vmul.f32 %v1324, %v1469
      %v1482 = vmul.f32 %v1326, %v1473
      %v1483 = vmul.f32 %v1431, %v1477
      %v1484 = vmul.f32 %v1330, %v1469
      %v1485 = vmul.f32 %v1332, %v1473
      %v1486 = vmul.f32 %v1436, %v1477
      %v1487 = vmul.f32 %v1336, %v1469
      %v1488 = vmul.f32 %v1338, %v1473
      %v1489 = vmul.f32 %v1441, %v1477
      %v1490 = vmul.f32 %v1342, %v1469
      %v1491 = vmul.f32 %v1344, %v1473
      %v1492 = vmul.f32 %v1446, %v1477
      %v1493 = vmul.f32 %v1348, %v1469
      %v1494 = vmul.f32 %v1350, %v1473
      %v1495 = vmul.f32 %v1451, %v1477
      %v1496 = vmul.f32 %v1354, %v1469
      %v1497 = vmul.f32 %v1356, %v1473
      %v1498 = vmul.f32 %v1456, %v1477
      %v1499 = vmul.f32 %v1360, %v1469
      %v1500 = vmul.f32 %v1362, %v1473
      %v1501 = vmul.f32 %v1461, %v1477
      %1502 = vst [vmem:[#allocation2] sm:$0xff] 0.0
      %1503 = vst [vmem:[#allocation2 + $0x28] sm:$0xff] 0.0
      %1504 = vst [vmem:[#allocation2 + $0x50] sm:$0xff] 0.0
      %1505 = vst [vmem:[#allocation2 + $0x78] sm:$0xff] 0.0
      %1506 = vst [vmem:[#allocation2 + $0xa0] sm:$0xff] 0.0
      %1507 = vst [vmem:[#allocation2 + $0xc8] sm:$0xff] 0.0
      %1508 = vst [vmem:[#allocation2 + $0xf0] sm:$0x1] 0.0
      %1509 = vst [vmem:[#allocation2 + $0x20] sm:$0xff] 0.0
      %1510 = vst [vmem:[#allocation2 + $0x48] sm:$0xff] 0.0
      %1511 = vst [vmem:[#allocation2 + $0x70] sm:$0xff] 0.0
      %1512 = vst [vmem:[#allocation2 + $0x98] sm:$0xff] 0.0
      %1513 = vst [vmem:[#allocation2 + $0xc0] sm:$0xff] 0.0
      %1514 = vst [vmem:[#allocation2 + $0xe8] sm:$0xff] 0.0
      %1515 = vst [vmem:[#allocation2 + $0x110] sm:$0x1] 0.0
      %1516 = vst [vmem:[#allocation2 + $0x8] sm:$0xff] %v1481
      %1517 = vst [vmem:[#allocation2 + $0x10] sm:$0xff] %v1482
      %1518 = vst [vmem:[#allocation2 + $0x18] sm:$0xff] %v1483
      %1519 = vst [vmem:[#allocation2 + $0x30] sm:$0xff] %v1484
      %1520 = vst [vmem:[#allocation2 + $0x38] sm:$0xff] %v1485
      %1521 = vst [vmem:[#allocation2 + $0x40] sm:$0xff] %v1486
      %1522 = vst [vmem:[#allocation2 + $0x58] sm:$0xff] %v1487
      %1523 = vst [vmem:[#allocation2 + $0x60] sm:$0xff] %v1488
      %1524 = vst [vmem:[#allocation2 + $0x68] sm:$0xff] %v1489
      %1525 = vst [vmem:[#allocation2 + $0x80] sm:$0xff] %v1490
      %1526 = vst [vmem:[#allocation2 + $0x88] sm:$0xff] %v1491
      %1527 = vst [vmem:[#allocation2 + $0x90] sm:$0xff] %v1492
      %1528 = vst [vmem:[#allocation2 + $0xa8] sm:$0xff] %v1493
      %1529 = vst [vmem:[#allocation2 + $0xb0] sm:$0xff] %v1494
      %1530 = vst [vmem:[#allocation2 + $0xb8] sm:$0xff] %v1495
      %1531 = vst [vmem:[#allocation2 + $0xd0] sm:$0xff] %v1496
      %1532 = vst [vmem:[#allocation2 + $0xd8] sm:$0xff] %v1497
      %1533 = vst [vmem:[#allocation2 + $0xe0] sm:$0xff] %v1498
      %1534 = vst [vmem:[#allocation2 + $0xf8] sm:$0x1] %v1499
      %1535 = vst [vmem:[#allocation2 + $0x100] sm:$0x1] %v1500
      %1536 = vst [vmem:[#allocation2 + $0x108] sm:$0x1] %v1501
      %v1537 = vld [vmem:[#allocation2] ss:$8 sm:$0xf]
      %s1538 = scalar_lea.vmem [#allocation2], 1
      %v1539 = vld [vmem:[%s1538] ss:$8 sm:$0xf]
      %s1540 = scalar_lea.vmem [#allocation2], 2
      %v1541 = vld [vmem:[%s1540] ss:$8 sm:$0xf]
      %s1542 = scalar_lea.vmem [#allocation2], 3
      %v1543 = vld [vmem:[%s1542] ss:$8 sm:$0xf]
      %s1544 = scalar_lea.vmem [#allocation2], 4
      %v1545 = vld [vmem:[%s1544] ss:$8 sm:$0xf]
      %s1546 = scalar_lea.vmem [#allocation2], 5
      %v1547 = vld [vmem:[%s1546] ss:$8 sm:$0xf]
      %s1548 = scalar_lea.vmem [#allocation2], 6
      %v1549 = vld [vmem:[%s1548] ss:$8 sm:$0xf]
      %s1550 = scalar_lea.vmem [#allocation2], 7
      %v1551 = vld [vmem:[%s1550] ss:$8 sm:$0xf]
      %s1552 = scalar_lea.vmem [#allocation2], 40
      %v1553 = vld [vmem:[%s1552] ss:$8 sm:$0xf]
      %1555 = vrot.lane.b32.xlu0 %v1553, 105
      %v1556 = vpop.permute.xlu0 %1555
      %v1557 = vrot.slane %v1556, 1
      %v1558 = vsel %vm383, %v1556, %v1557
      %v1560 = vadd.f32 %v1537, %v1558
      %s1561 = scalar_lea.vmem [#allocation2], 41
      %v1562 = vld [vmem:[%s1561] ss:$8 sm:$0xf]
      %1564 = vrot.lane.b32.xlu0 %v1562, 105
      %v1565 = vpop.permute.xlu0 %1564
      %v1566 = vrot.slane %v1565, 1
      %v1567 = vsel %vm383, %v1565, %v1566
      %v1569 = vadd.f32 %v1539, %v1567
      %s1570 = scalar_lea.vmem [#allocation2], 42
      %v1571 = vld [vmem:[%s1570] ss:$8 sm:$0xf]
      %1573 = vrot.lane.b32.xlu0 %v1571, 105
      %v1574 = vpop.permute.xlu0 %1573
      %v1575 = vrot.slane %v1574, 1
      %v1576 = vsel %vm383, %v1574, %v1575
      %v1578 = vadd.f32 %v1541, %v1576
      %s1579 = scalar_lea.vmem [#allocation2], 43
      %v1580 = vld [vmem:[%s1579] ss:$8 sm:$0xf]
      %1582 = vrot.lane.b32.xlu0 %v1580, 105
      %v1583 = vpop.permute.xlu0 %1582
      %v1584 = vrot.slane %v1583, 1
      %v1585 = vsel %vm383, %v1583, %v1584
      %v1587 = vadd.f32 %v1543, %v1585
      %s1588 = scalar_lea.vmem [#allocation2], 44
      %v1589 = vld [vmem:[%s1588] ss:$8 sm:$0xf]
      %1591 = vrot.lane.b32.xlu0 %v1589, 105
      %v1592 = vpop.permute.xlu0 %1591
      %v1593 = vrot.slane %v1592, 1
      %v1594 = vsel %vm383, %v1592, %v1593
      %v1596 = vadd.f32 %v1545, %v1594
      %s1597 = scalar_lea.vmem [#allocation2], 45
      %v1598 = vld [vmem:[%s1597] ss:$8 sm:$0xf]
      %1600 = vrot.lane.b32.xlu0 %v1598, 105
      %v1601 = vpop.permute.xlu0 %1600
      %v1602 = vrot.slane %v1601, 1
      %v1603 = vsel %vm383, %v1601, %v1602
      %v1605 = vadd.f32 %v1547, %v1603
      %s1606 = scalar_lea.vmem [#allocation2], 46
      %v1607 = vld [vmem:[%s1606] ss:$8 sm:$0xf]
      %1609 = vrot.lane.b32.xlu0 %v1607, 90
      %v1610 = vpop.permute.xlu0 %1609
      %v1611 = vrot.slane %v1610, 1
      %vm1612 = vcmask 736256
      %v1613 = vsel %vm1612, %v1610, %v1611
      %v1615 = vadd.f32 %v1549, %v1613
      %s1616 = scalar_lea.vmem [#allocation2], 47
      %v1617 = vld [vmem:[%s1616] ss:$8 sm:$0xf]
      %1619 = vrot.lane.b32.xlu0 %v1617, 105
      %v1620 = vpop.permute.xlu0 %1619
      %v1621 = vrot.slane %v1620, 1
      %v1622 = vsel %vm383, %v1620, %v1621
      %v1624 = vadd.f32 %v1551, %v1622
      %s1625 = scalar_lea.vmem [#allocation2], 80
      %v1626 = vld [vmem:[%s1625] ss:$8 sm:$0xf]
      %1628 = vrot.lane.b32.xlu0 %v1626, 82
      %v1629 = vpop.permute.xlu0 %1628
      %v1630 = vrot.slane %v1629, 1
      %v1631 = vsel %vm811, %v1629, %v1630
      %v1633 = vadd.f32 %v1560, %v1631
      %s1634 = scalar_lea.vmem [#allocation2], 81
      %v1635 = vld [vmem:[%s1634] ss:$8 sm:$0xf]
      %1637 = vrot.lane.b32.xlu0 %v1635, 82
      %v1638 = vpop.permute.xlu0 %1637
      %v1639 = vrot.slane %v1638, 1
      %v1640 = vsel %vm811, %v1638, %v1639
      %v1642 = vadd.f32 %v1569, %v1640
      %s1643 = scalar_lea.vmem [#allocation2], 82
      %v1644 = vld [vmem:[%s1643] ss:$8 sm:$0xf]
      %1646 = vrot.lane.b32.xlu0 %v1644, 82
      %v1647 = vpop.permute.xlu0 %1646
      %v1648 = vrot.slane %v1647, 1
      %v1649 = vsel %vm811, %v1647, %v1648
      %v1651 = vadd.f32 %v1578, %v1649
      %s1652 = scalar_lea.vmem [#allocation2], 83
      %v1653 = vld [vmem:[%s1652] ss:$8 sm:$0xf]
      %1655 = vrot.lane.b32.xlu0 %v1653, 82
      %v1656 = vpop.permute.xlu0 %1655
      %v1657 = vrot.slane %v1656, 1
      %v1658 = vsel %vm811, %v1656, %v1657
      %v1660 = vadd.f32 %v1587, %v1658
      %s1661 = scalar_lea.vmem [#allocation2], 84
      %v1662 = vld [vmem:[%s1661] ss:$8 sm:$0xf]
      %1664 = vrot.lane.b32.xlu0 %v1662, 82
      %v1665 = vpop.permute.xlu0 %1664
      %v1666 = vrot.slane %v1665, 1
      %v1667 = vsel %vm811, %v1665, %v1666
      %v1669 = vadd.f32 %v1596, %v1667
      %s1670 = scalar_lea.vmem [#allocation2], 85
      %v1671 = vld [vmem:[%s1670] ss:$8 sm:$0xf]
      %1673 = vrot.lane.b32.xlu0 %v1671, 67
      %v1674 = vpop.permute.xlu0 %1673
      %v1675 = vrot.slane %v1674, 1
      %vm1676 = vcmask 547840
      %v1677 = vsel %vm1676, %v1674, %v1675
      %v1679 = vadd.f32 %v1605, %v1677
      %s1680 = scalar_lea.vmem [#allocation2], 86
      %v1681 = vld [vmem:[%s1680] ss:$8 sm:$0xf]
      %1683 = vrot.lane.b32.xlu0 %v1681, 67
      %v1684 = vpop.permute.xlu0 %1683
      %v1685 = vrot.slane %v1684, 1
      %v1686 = vsel %vm1676, %v1684, %v1685
      %v1688 = vadd.f32 %v1615, %v1686
      %s1689 = scalar_lea.vmem [#allocation2], 87
      %v1690 = vld [vmem:[%s1689] ss:$8 sm:$0xf]
      %1692 = vrot.lane.b32.xlu0 %v1690, 82
      %v1693 = vpop.permute.xlu0 %1692
      %v1694 = vrot.slane %v1693, 1
      %v1695 = vsel %vm811, %v1693, %v1694
      %v1697 = vadd.f32 %v1624, %v1695
      %s1698 = scalar_lea.vmem [#allocation2], 128
      %v1699 = vld [vmem:[%s1698] ss:$8 sm:$0x7]
      %1701 = vrot.lane.b32.xlu0 %v1699, 59
      %v1702 = vpop.permute.xlu0 %1701
      %v1703 = vrot.slane %v1702, 7
      %vm1704 = vcmask 482304
      %v1705 = vsel %vm1704, %v1703, %v1702
      %v1707 = vadd.f32 %v1633, %v1705
      %s1708 = scalar_lea.vmem [#allocation2], 129
      %v1709 = vld [vmem:[%s1708] ss:$8 sm:$0xf]
      %1711 = vrot.lane.b32.xlu0 %v1709, 59
      %v1712 = vpop.permute.xlu0 %1711
      %v1713 = vrot.slane %v1712, 7
      %v1714 = vsel %vm1704, %v1713, %v1712
      %v1716 = vadd.f32 %v1642, %v1714
      %s1717 = scalar_lea.vmem [#allocation2], 130
      %v1718 = vld [vmem:[%s1717] ss:$8 sm:$0xf]
      %1720 = vrot.lane.b32.xlu0 %v1718, 59
      %v1721 = vpop.permute.xlu0 %1720
      %v1722 = vrot.slane %v1721, 7
      %v1723 = vsel %vm1704, %v1722, %v1721
      %v1725 = vadd.f32 %v1651, %v1723
      %s1726 = scalar_lea.vmem [#allocation2], 131
      %v1727 = vld [vmem:[%s1726] ss:$8 sm:$0xf]
      %1729 = vrot.lane.b32.xlu0 %v1727, 59
      %v1730 = vpop.permute.xlu0 %1729
      %v1731 = vrot.slane %v1730, 7
      %v1732 = vsel %vm1704, %v1731, %v1730
      %v1734 = vadd.f32 %v1660, %v1732
      %s1735 = scalar_lea.vmem [#allocation2], 132
      %v1736 = vld [vmem:[%s1735] ss:$8 sm:$0xf]
      %1738 = vrot.lane.b32.xlu0 %v1736, 44
      %v1739 = vpop.permute.xlu0 %1738
      %v1740 = vrot.slane %v1739, 7
      %vm1741 = vcmask 359424
      %v1742 = vsel %vm1741, %v1740, %v1739
      %v1744 = vadd.f32 %v1669, %v1742
      %s1745 = scalar_lea.vmem [#allocation2], 133
      %v1746 = vld [vmem:[%s1745] ss:$8 sm:$0xf]
      %1748 = vrot.lane.b32.xlu0 %v1746, 44
      %v1749 = vpop.permute.xlu0 %1748
      %v1750 = vrot.slane %v1749, 7
      %v1751 = vsel %vm1741, %v1750, %v1749
      %v1753 = vadd.f32 %v1679, %v1751
      %s1754 = scalar_lea.vmem [#allocation2], 134
      %v1755 = vld [vmem:[%s1754] ss:$8 sm:$0xf]
      %1757 = vrot.lane.b32.xlu0 %v1755, 44
      %v1758 = vpop.permute.xlu0 %1757
      %v1759 = vrot.slane %v1758, 7
      %v1760 = vsel %vm1741, %v1759, %v1758
      %v1762 = vadd.f32 %v1688, %v1760
      %s1763 = scalar_lea.vmem [#allocation2], 135
      %v1764 = vld [vmem:[%s1763] ss:$8 sm:$0xf]
      %1766 = vrot.lane.b32.xlu0 %v1764, 59
      %v1767 = vpop.permute.xlu0 %1766
      %v1768 = vrot.slane %v1767, 7
      %v1769 = vsel %vm1704, %v1768, %v1767
      %v1771 = vadd.f32 %v1697, %v1769
      %s1772 = scalar_lea.vmem [#allocation2], 168
      %v1773 = vld [vmem:[%s1772] ss:$8 sm:$0xf]
      %1775 = vrot.lane.b32.xlu0 %v1773, 36
      %v1776 = vpop.permute.xlu0 %1775
      %v1777 = vrot.slane %v1776, 7
      %v1778 = vsel %vm848, %v1777, %v1776
      %v1780 = vadd.f32 %v1707, %v1778
      %s1781 = scalar_lea.vmem [#allocation2], 169
      %v1782 = vld [vmem:[%s1781] ss:$8 sm:$0xf]
      %1784 = vrot.lane.b32.xlu0 %v1782, 36
      %v1785 = vpop.permute.xlu0 %1784
      %v1786 = vrot.slane %v1785, 7
      %v1787 = vsel %vm848, %v1786, %v1785
      %v1789 = vadd.f32 %v1716, %v1787
      %s1790 = scalar_lea.vmem [#allocation2], 170
      %v1791 = vld [vmem:[%s1790] ss:$8 sm:$0xf]
      %1793 = vrot.lane.b32.xlu0 %v1791, 36
      %v1794 = vpop.permute.xlu0 %1793
      %v1795 = vrot.slane %v1794, 7
      %v1796 = vsel %vm848, %v1795, %v1794
      %v1798 = vadd.f32 %v1725, %v1796
      %s1799 = scalar_lea.vmem [#allocation2], 171
      %v1800 = vld [vmem:[%s1799] ss:$8 sm:$0xf]
      %1802 = vrot.lane.b32.xlu0 %v1800, 21
      %v1803 = vpop.permute.xlu0 %1802
      %v1804 = vrot.slane %v1803, 7
      %vm1805 = vcmask 171008
      %v1806 = vsel %vm1805, %v1804, %v1803
      %v1808 = vadd.f32 %v1734, %v1806
      %s1809 = scalar_lea.vmem [#allocation2], 172
      %v1810 = vld [vmem:[%s1809] ss:$8 sm:$0xf]
      %1812 = vrot.lane.b32.xlu0 %v1810, 21
      %v1813 = vpop.permute.xlu0 %1812
      %v1814 = vrot.slane %v1813, 7
      %v1815 = vsel %vm1805, %v1814, %v1813
      %v1817 = vadd.f32 %v1744, %v1815
      %s1818 = scalar_lea.vmem [#allocation2], 173
      %v1819 = vld [vmem:[%s1818] ss:$8 sm:$0xf]
      %1821 = vrot.lane.b32.xlu0 %v1819, 21
      %v1822 = vpop.permute.xlu0 %1821
      %v1823 = vrot.slane %v1822, 7
      %v1824 = vsel %vm1805, %v1823, %v1822
      %v1826 = vadd.f32 %v1753, %v1824
      %s1827 = scalar_lea.vmem [#allocation2], 174
      %v1828 = vld [vmem:[%s1827] ss:$8 sm:$0xf]
      %1830 = vrot.lane.b32.xlu0 %v1828, 21
      %v1831 = vpop.permute.xlu0 %1830
      %v1832 = vrot.slane %v1831, 7
      %v1833 = vsel %vm1805, %v1832, %v1831
      %v1835 = vadd.f32 %v1762, %v1833
      %s1836 = scalar_lea.vmem [#allocation2], 175
      %v1837 = vld [vmem:[%s1836] ss:$8 sm:$0xf]
      %1839 = vrot.lane.b32.xlu0 %v1837, 36
      %v1840 = vpop.permute.xlu0 %1839
      %v1841 = vrot.slane %v1840, 7
      %v1842 = vsel %vm848, %v1841, %v1840
      %v1844 = vadd.f32 %v1771, %v1842
      %s1845 = scalar_lea.vmem [#allocation2], 208
      %v1846 = vld [vmem:[%s1845] ss:$8 sm:$0xf]
      %1848 = vrot.lane.b32.xlu0 %v1846, 13
      %v1849 = vpop.permute.xlu0 %1848
      %v1850 = vrot.slane %v1849, 7
      %vm1851 = vcmask 105472
      %v1852 = vsel %vm1851, %v1850, %v1849
      %v1854 = vadd.f32 %v1780, %v1852
      %s1855 = scalar_lea.vmem [#allocation2], 209
      %v1856 = vld [vmem:[%s1855] ss:$8 sm:$0xf]
      %1858 = vrot.lane.b32.xlu0 %v1856, 13
      %v1859 = vpop.permute.xlu0 %1858
      %v1860 = vrot.slane %v1859, 7
      %v1861 = vsel %vm1851, %v1860, %v1859
      %v1863 = vadd.f32 %v1789, %v1861
      %s1864 = scalar_lea.vmem [#allocation2], 210
      %v1865 = vld [vmem:[%s1864] ss:$8 sm:$0xf]
      %1867 = vrot.lane.b32.xlu0 %v1865, 126
      %v1868 = vpop.permute.xlu0 %1867
      %v1869 = vrot.slane %v1868, 1
      %v1870 = vsel %vm293, %v1868, %v1869
      %v1872 = vadd.f32 %v1798, %v1870
      %s1873 = scalar_lea.vmem [#allocation2], 211
      %v1874 = vld [vmem:[%s1873] ss:$8 sm:$0xf]
      %1876 = vrot.lane.b32.xlu0 %v1874, 126
      %v1877 = vpop.permute.xlu0 %1876
      %v1878 = vrot.slane %v1877, 1
      %v1879 = vsel %vm293, %v1877, %v1878
      %v1881 = vadd.f32 %v1808, %v1879
      %s1882 = scalar_lea.vmem [#allocation2], 212
      %v1883 = vld [vmem:[%s1882] ss:$8 sm:$0xf]
      %1885 = vrot.lane.b32.xlu0 %v1883, 126
      %v1886 = vpop.permute.xlu0 %1885
      %v1887 = vrot.slane %v1886, 1
      %v1888 = vsel %vm293, %v1886, %v1887
      %v1890 = vadd.f32 %v1817, %v1888
      %s1891 = scalar_lea.vmem [#allocation2], 213
      %v1892 = vld [vmem:[%s1891] ss:$8 sm:$0xf]
      %1894 = vrot.lane.b32.xlu0 %v1892, 126
      %v1895 = vpop.permute.xlu0 %1894
      %v1896 = vrot.slane %v1895, 1
      %v1897 = vsel %vm293, %v1895, %v1896
      %v1899 = vadd.f32 %v1826, %v1897
      %s1900 = scalar_lea.vmem [#allocation2], 214
      %v1901 = vld [vmem:[%s1900] ss:$8 sm:$0xf]
      %1903 = vrot.lane.b32.xlu0 %v1901, 126
      %v1904 = vpop.permute.xlu0 %1903
      %v1905 = vrot.slane %v1904, 1
      %v1906 = vsel %vm293, %v1904, %v1905
      %v1908 = vadd.f32 %v1835, %v1906
      %s1909 = scalar_lea.vmem [#allocation2], 215
      %v1910 = vld [vmem:[%s1909] ss:$8 sm:$0xf]
      %1912 = vrot.lane.b32.xlu0 %v1910, 13
      %v1913 = vpop.permute.xlu0 %1912
      %v1914 = vrot.slane %v1913, 7
      %v1915 = vsel %vm1851, %v1914, %v1913
      %v1917 = vadd.f32 %v1844, %v1915
      %s1918 = scalar_lea.vmem [#allocation2], 248
      %v1919 = vld [vmem:[%s1918] ss:$8 sm:$0xf]
      %1921 = vrot.lane.b32.xlu0 %v1919, 118
      %v1922 = vpop.permute.xlu0 %1921
      %v1923 = vrot.slane %v1922, 1
      %v1924 = vsel %vm869, %v1922, %v1923
      %v1926 = vadd.f32 %v1854, %v1924
      %1928 = vrot.lane.b32.xlu0 %v1863, 127
      %v1929 = vpop.permute.xlu0 %1928
      %v1930 = vrot.slane %v1929, 1
      %v1931 = vsel %vm278, %v1929, %v1930
      %v1933 = vadd.f32 %v1926, %v1931
      %1935 = vrot.lane.b32.xlu0 %v1881, 127
      %v1936 = vpop.permute.xlu0 %1935
      %v1937 = vrot.slane %v1936, 1
      %v1938 = vsel %vm278, %v1936, %v1937
      %v1940 = vadd.f32 %v1872, %v1938
      %1942 = vrot.lane.b32.xlu0 %v1940, 126
      %v1943 = vpop.permute.xlu0 %1942
      %v1944 = vrot.slane %v1943, 1
      %v1945 = vsel %vm293, %v1943, %v1944
      %v1947 = vadd.f32 %v1933, %v1945
      %1949 = vrot.lane.b32.xlu0 %v1899, 127
      %v1950 = vpop.permute.xlu0 %1949
      %v1951 = vrot.slane %v1950, 1
      %v1952 = vsel %vm278, %v1950, %v1951
      %v1954 = vadd.f32 %v1890, %v1952
      %1956 = vrot.lane.b32.xlu0 %v1917, 112
      %v1957 = vpop.permute.xlu0 %1956
      %v1958 = vrot.slane %v1957, 1
      %vm1959 = vcmask 916480
      %v1960 = vsel %vm1959, %v1957, %v1958
      %v1962 = vadd.f32 %v1908, %v1960
      %1964 = vrot.lane.b32.xlu0 %v1962, 126
      %v1965 = vpop.permute.xlu0 %1964
      %v1966 = vrot.slane %v1965, 1
      %v1967 = vsel %vm293, %v1965, %v1966
      %v1969 = vadd.f32 %v1954, %v1967
      %1971 = vrot.lane.b32.xlu0 %v1969, 124
      %v1972 = vpop.permute.xlu0 %1971
      %v1973 = vrot.slane %v1972, 1
      %v1974 = vsel %vm323, %v1972, %v1973
      %v1976 = vadd.f32 %v1947, %v1974
      %1978 = vrot.lane.b32.xlu0 %v1976, 10
      %v1979 = vpop.permute.xlu0 %1978
      %v1980 = vrot.slane %v1979, 7
      %vm1981 = vcmask 80896
      %v1982 = vsel %vm1981, %v1980, %v1979
      %v1984 = vadd.f32 %v249, %v1982
      %v1985 = vld [vmem:[#allocation3] sm:$0x1]
      %1987 = vset.pattern.permute.xlu0 0
      %1988 = vperm.xlu0 %1987, %v1985
      %v1989 = vpop.permute.xlu0 %1988
      %v1991 = vlaneseq
      %v1992 = vshrl.u32 %v1991, 7
      %v1993 = vsub.s32 0, %v1992
      %v1994 = vrot.slane %v1989, %v1993
      %v1995 = vadd.f32 %v1984, %v1994
      %1997 = vrot.lane.b32.xlu0 %v1995, 59
      %v1998 = vpop.permute.xlu0 %1997
      %v1999 = vrot.slane %v1998, 1
      %v2000 = vsel %vm1704, %v1998, %v1999
      %v2002 = vlaneseq
      %vm2003 = vcmp.ge.s32.totalorder %v2002, 0
      %vm2004 = vcmp.lt.s32.totalorder %v2002, 384
      %vm2005 = vmand %vm2003, %vm2004
      %2006 = vst.msk [vmem:[%s248] sm:$0x7] %vm2005, %v2000
      %p2007 = scmp.lt.s32.totalorder %s19, 1
      %s2008 = scalar_select %p2007, %s19, 1
      %s2009 = smul.addr %s2008, 3
      %s2010 = scalar_lea.vmem %s6, %s2009
      // Predicated region
      $region45: #{dct_forward.1} parent=43 // pred_check
        %p2011 = pneg %p168
      $region46: #{dct_forward.1} parent=43 // pred_check_branch
        %2013 = sbr.rel (%p2011) target = $region48
      $region47: #{dct_forward.1} parent=43 // pred_region
        _
      $region48: #{dct_forward.1} parent=43 // pred_fallthru
        _
    $region44: #{dct_forward.1} parent=5 // pred_fallthru
      _
    %p2014 = scmp.le.s32.totalorder 2, %s14
    // Predicated region
    $region49: #{dct_forward.1} parent=5 // pred_check
      %p2015 = pneg %p2014
    $region50: #{dct_forward.1} parent=5 // pred_check_branch
      %2017 = sbr.rel (%p2015) target = $region52
    $region51: #{dct_forward.1} parent=5 // pred_region
      %s2018 = ssub.s32 %s14, 2
      // Predicated region
      $region53: #{dct_forward.1} parent=51 // pred_check
        %p2019 = pneg %p174
      $region54: #{dct_forward.1} parent=51 // pred_check_branch
        %2021 = sbr.rel (%p2019) target = $region56
      $region55: #{dct_forward.1} parent=51 // pred_region
        %p2022 = scmp.lt.s32.totalorder %s20, 1
        %s2023 = scalar_select %p2022, %s20, 1
        %s2024 = smul.addr %s2023, 3
        %s2025 = scalar_lea.vmem %s6, %s2024
      $region56: #{dct_forward.1} parent=51 // pred_fallthru
        _
    $region52: #{dct_forward.1} parent=5 // pred_fallthru
      _
  $region6: #{dct_forward.1} parent=0 // loop_footer
    %s18 = sadd.s32 1, %s14
  $region7: #{dct_forward.1} parent=0 // loop_footer_branch
    %13 = sbr.rel target = $region3
  $region8: #{dct_forward.1} parent=0 // loop_exit
    _

</llo_original>
